<compile_context>
chip_gen: v6e
topology: v6e:2x2x1
jax: 0.10.0
libtpu: 0.0.40
codegen_flags: <defaults>
</compile_context>

<pallas_src>
import functools

import jax
import jax.numpy as jnp
from jax.experimental import pallas as pl
from jax.experimental.pallas import tpu as pltpu


def _round_up(x, m):
    return ((x + m - 1) // m) * m


def _cdiv(a, b):
    return -(-a // b)


@functools.lru_cache(maxsize=1)
def _tpu_budgets():
    """Generation-aware (buffer_budget_bytes, vmem_limit_bytes).

    v5e/v6e (128 MiB physical VMEM) -> limit 72 MiB, budget 64 MiB.
    v7x     ( 64 MiB physical VMEM) -> limit 40 MiB, budget 32 MiB.
    Unknown backend -> conservative v7x numbers.
    """
    vmem_cap = 64 << 20
    try:
        vmem_cap = int(pltpu.get_tpu_info().vmem_capacity_bytes)
    except Exception:
        pass
    vmem_cap = max(32 << 20, min(vmem_cap, 256 << 20))
    vmem_limit = min(96 << 20, vmem_cap // 2 + (8 << 20))
    budget = vmem_limit - (8 << 20)
    return budget, vmem_limit


@functools.lru_cache(maxsize=1)
def _mxu_width():
    """128 on v5e and older, 256 on v6e/v7x (2x256^2 MXUs)."""
    try:
        kind = jax.devices()[0].device_kind.lower()
        if any(v in kind for v in ("v2", "v3", "v4", "v5")):
            return 128
    except Exception:
        pass
    return 256


# ----------------------------------------------------------------------------
# Pallas kernel: K-tiled (patch @ weight) accumulation, then + bias, ReLU.
#   p_ref:    (tm, tk)  bf16 patch tile
#   w_ref:    (tk, tn)  bf16 weight tile (BN scale pre-folded)
#   bias_ref: (1, tn)   f32 folded BN bias
#   o_ref:    (tm, tn)  bf16 output tile
#   acc_ref:  (tm, tn)  f32 accumulator scratch
# Grid = (M blocks, Cout blocks, K blocks); K is the trailing reduction axis.
# ----------------------------------------------------------------------------
def _conv_bn_relu_kernel(p_ref, w_ref, bias_ref, o_ref, acc_ref):
    k = pl.program_id(2)

    @pl.when(k == 0)
    def _():
        acc_ref[...] = jnp.zeros_like(acc_ref)

    acc_ref[...] += jnp.dot(p_ref[...], w_ref[...],
                            preferred_element_type=jnp.float32)

    @pl.when(k == pl.num_programs(2) - 1)
    def _():
        y = acc_ref[...] + bias_ref[...]              # f32 epilogue (v5e-safe)
        o_ref[...] = jnp.maximum(y, 0.0).astype(o_ref.dtype)


# ----------------------------------------------------------------------------
# Tile selection
# ----------------------------------------------------------------------------
def _pick_weight_tiles(K, cout_pad, budget):
    """Return (k_pad, tk, tn) for the weight matrix, chosen once per layer."""
    w_budget = max(int(budget * 0.45), 4 << 20)
    tns = []
    for t in (cout_pad, 2048, 1024, 512, 256, 128):
        if t <= cout_pad and cout_pad % t == 0 and t not in tns:
            tns.append(t)

    # Prefer whole-K residency (single k step, no accumulator carried across
    # grid steps) with the widest Cout tile that fits the weight budget.
    for tn in tns:
        if 4 * K * tn <= w_budget:                    # 2 bufs x bf16
            return K, K, tn

    # Otherwise grid-tile K: maximize tk (512-multiples), bounded so the
    # patch stream still fits at the smallest M tile.
    tk_cap = max(512, (budget // 2048) // 512 * 512)
    for tn in tns:
        tk_max = min((w_budget // (4 * tn)) // 512 * 512, tk_cap)
        if tk_max >= 512:
            n_k = _cdiv(_round_up(K, 512), tk_max)
            tk = _round_up(_cdiv(K, n_k), 512)
            return n_k * tk, tk, tn
    return _round_up(K, 512), 512, tns[-1]


def _pick_tm(M, tk, tn, budget):
    """Largest M tile fitting the budget next to the weight/bias blocks."""
    fixed = 4 * tk * tn + 8 * tn                      # weights 2x bf16, bias 2x f32
    per_row = 4 * tk + 8 * tn                         # patches 2x bf16, out 2x bf16, acc f32
    tm0 = 128
    for cand in (2048, 1536, 1024, 768, 512, 384, 256, 128):
        if fixed + cand * per_row <= budget:
            tm0 = cand
            break
    # Balance so the last M tile is not mostly padding; keep multiples of 16
    # (one bf16 vreg packs 16 sublanes).
    n_m = _cdiv(M, tm0)
    return max(16, _round_up(_cdiv(M, n_m), 16))


# ----------------------------------------------------------------------------
# Fused (patches @ weights) + bias + ReLU wrapper.
# ----------------------------------------------------------------------------
def _fused_matmul_bn_relu(patches, w_mat, bias, cout, tk, tn, budget,
                          vmem_limit):
    """patches: (M, K) bf16; w_mat: (k_pad, cout_pad) bf16; bias: (1, cout_pad) f32."""
    M, K = patches.shape
    k_pad, cout_pad = w_mat.shape

    if k_pad != K:
        patches = jnp.pad(patches, ((0, 0), (0, k_pad - K)))

    tm = _pick_tm(M, tk, tn, budget)
    M_pad = _round_up(M, tm)
    if M_pad != M:
        patches = jnp.pad(patches, ((0, M_pad - M), (0, 0)))

    grid = (M_pad // tm, cout_pad // tn, k_pad // tk)

    out = pl.pallas_call(
        _conv_bn_relu_kernel,
        out_shape=jax.ShapeDtypeStruct((M_pad, cout_pad), jnp.bfloat16),
        grid_spec=pltpu.PrefetchScalarGridSpec(
            num_scalar_prefetch=0,
            grid=grid,
            in_specs=[
                pl.BlockSpec((tm, tk), lambda i, j, k: (i, k)),
                pl.BlockSpec((tk, tn), lambda i, j, k: (k, j)),
                pl.BlockSpec((1, tn), lambda i, j, k: (0, j)),
            ],
            out_specs=pl.BlockSpec((tm, tn), lambda i, j, k: (i, j)),
            scratch_shapes=[pltpu.VMEM((tm, tn), jnp.float32)],
        ),
        compiler_params=pltpu.CompilerParams(
            # TODO(synk): on v7x confirm the 'parallel' M axis shards across
            # both TensorCores; switch to pltpu.CORE_PARALLEL if it does not.
            dimension_semantics=("parallel", "parallel", "arbitrary"),
            vmem_limit_bytes=vmem_limit,
        ),
    )(patches, w_mat, bias)
    return out[:M, :cout]


# ----------------------------------------------------------------------------
# im2col patch extraction (bf16, plain JAX slices; only used for KH*KW > 1).
# ----------------------------------------------------------------------------
def _im2col_nhwc(x_nhwc, kh, kw, stride, padding, dilation):
    N, H, W, C = x_nhwc.shape
    xp = jnp.pad(x_nhwc, ((0, 0), (padding, padding), (padding, padding), (0, 0)))
    Hout = (H + 2 * padding - dilation * (kh - 1) - 1) // stride + 1
    Wout = (W + 2 * padding - dilation * (kw - 1) - 1) // stride + 1
    cols = []
    for i in range(kh):
        for j in range(kw):
            r0 = i * dilation
            c0 = j * dilation
            patch = xp[:, r0:r0 + stride * (Hout - 1) + 1:stride,
                          c0:c0 + stride * (Wout - 1) + 1:stride, :]
            cols.append(patch)
    # feature ordering: (kh, kw, cin) -- must match the weight matrix layout.
    patches = jnp.concatenate(cols, axis=-1)          # (N, Hout, Wout, kh*kw*C)
    return patches.reshape(N * Hout * Wout, kh * kw * C), Hout, Wout


class BasicConv2dPallas:
    """Conv2d(bias=False) + BatchNorm2d(eval, folded) + ReLU, fused on TPU."""

    def __init__(self, in_planes, out_planes, kernel_size=1, stride=1,
                 padding=0, dilation=1, eps=1e-5, key=None):
        self.in_planes = in_planes
        self.out_planes = out_planes
        self.kh = self.kw = kernel_size
        self.stride = stride
        self.padding = padding
        self.dilation = dilation
        self.eps = eps

        if key is None:
            key = jax.random.PRNGKey(0)
        kw_, kg, kb, km, kv = jax.random.split(key, 5)

        # Conv weight in PyTorch layout (Cout, Cin, KH, KW), deterministic init.
        fan_in = in_planes * kernel_size * kernel_size
        self.weight = (jax.random.normal(
            kw_, (out_planes, in_planes, kernel_size, kernel_size),
            dtype=jnp.float32) / jnp.sqrt(fan_in))

        # BatchNorm parameters / running stats (deterministic).
        self.gamma = 1.0 + 0.1 * jax.random.normal(kg, (out_planes,), jnp.float32)
        self.beta = 0.1 * jax.random.normal(kb, (out_planes,), jnp.float32)
        self.running_mean = 0.1 * jax.random.normal(km, (out_planes,), jnp.float32)
        self.running_var = 0.5 + jnp.abs(
            jax.random.normal(kv, (out_planes,), jnp.float32))

        # Hardware-aware tiling decisions (done once at weight-prep time).
        budget, vmem_limit = _tpu_budgets()
        self._budget = budget
        self._vmem_limit = vmem_limit

        # Lane-dense Cout padding; 256-aligned on 256-wide-MXU chips (v6e/v7x).
        cout_align = 256 if (_mxu_width() == 256 and out_planes > 128) else 128
        cout_pad = _round_up(out_planes, cout_align)
        K = kernel_size * kernel_size * in_planes
        k_pad, tk, tn = _pick_weight_tiles(K, cout_pad, budget)
        self.k = K
        self.cout_pad = cout_pad
        self.tk = tk
        self.tn = tn

        # Fold BN: scale into weight columns (f32), bias stays separate.
        scale = self.gamma / jnp.sqrt(self.running_var + eps)
        bias = self.beta - self.running_mean * scale

        # (KH*KW*Cin, Cout) matrix matching the im2col feature order, scale
        # folded in f32, then cast to bf16 and zero-padded.
        w_mat = jnp.transpose(self.weight, (2, 3, 1, 0)).reshape(K, out_planes)
        w_mat = w_mat * scale[None, :]
        w_mat = jnp.pad(w_mat, ((0, k_pad - K), (0, cout_pad - out_planes)))
        self.w_mat = w_mat.astype(jnp.bfloat16)

        self.bias = jnp.pad(bias, (0, cout_pad - out_planes)).reshape(
            1, cout_pad).astype(jnp.float32)

    def __call__(self, x, channels_last=False):
        """x: NCHW (default, PyTorch parity) or NHWC (channels_last=True).

        channels_last=True keeps activations NHWC end-to-end and skips both
        full-HBM transpose passes; recommended when stacking these layers.
        Output is bf16 (bf16 MXU inputs, f32 accumulation).
        """
        if channels_last:
            x_nhwc = x.astype(jnp.bfloat16)
        else:
            # Fuse the unavoidable layout change with the bf16 cast.
            x_nhwc = jnp.transpose(x, (0, 2, 3, 1)).astype(jnp.bfloat16)
        N, H, W, _ = x_nhwc.shape

        if (self.kh == 1 and self.kw == 1 and self.stride == 1
                and self.padding == 0):
            # 1x1 conv: im2col is a free reshape, no extra HBM traffic.
            patches = x_nhwc.reshape(N * H * W, self.in_planes)
            Hout, Wout = H, W
        else:
            # TODO(synk): KH*KW>1 still materializes a bf16 im2col matrix in
            # HBM; an in-kernel halo-DMA path (memory_space=pl.ANY + manual
            # make_async_copy of shifted row slabs) would remove the extra
            # ~KH*KW x activation traffic but is not implemented here.
            patches, Hout, Wout = _im2col_nhwc(
                x_nhwc, self.kh, self.kw, self.stride, self.padding,
                self.dilation)

        out_flat = _fused_matmul_bn_relu(
            patches, self.w_mat, self.bias, self.out_planes,
            self.tk, self.tn, self._budget, self._vmem_limit)
        out_nhwc = out_flat.reshape(N, Hout, Wout, self.out_planes)
        if channels_last:
            return out_nhwc
        return jnp.transpose(out_nhwc, (0, 3, 1, 2))   # back to NCHW


# ----------------------------------------------------------------------------
# Reference (plain JAX, f32) for a correctness check.
# ----------------------------------------------------------------------------
def _reference(module, x_nchw):
    y = jax.lax.conv_general_dilated(
        x_nchw.astype(jnp.float32), module.weight,
        window_strides=(module.stride, module.stride),
        padding=[(module.padding, module.padding)] * 2,
        rhs_dilation=(module.dilation, module.dilation),
        dimension_numbers=("NCHW", "OIHW", "NCHW"))
    scale = module.gamma / jnp.sqrt(module.running_var + module.eps)
    bias = module.beta - module.running_mean * scale
    y = y * scale.reshape(1, -1, 1, 1) + bias.reshape(1, -1, 1, 1)
    return jnp.maximum(y, 0.0)


if __name__ == "__main__":
    key = jax.random.PRNGKey(0)
    k_in, k_mod1, k_mod2 = jax.random.split(key, 3)

    # Small shapes consistent with the module: NCHW input.
    N, Cin, H, W = 2, 4, 16, 16
    Cout = 8
    x = jax.random.normal(k_in, (N, Cin, H, W), dtype=jnp.float32)

    # 1x1 conv (free-reshape fast path).
    mod1 = BasicConv2dPallas(Cin, Cout, kernel_size=1, stride=1, padding=0,
                             dilation=1, key=k_mod1)
    out1 = jax.block_until_ready(mod1(x))
    ref1 = jax.block_until_ready(_reference(mod1, x))
    assert out1.shape == (N, Cout, H, W), out1.shape
    assert jnp.allclose(out1.astype(jnp.float32), ref1,
                        atol=6e-2, rtol=6e-2), float(
        jnp.max(jnp.abs(out1.astype(jnp.float32) - ref1)))

    # 3x3 conv, padding=1 (im2col path, same fused GEMM kernel).
    mod2 = BasicConv2dPallas(Cin, Cout, kernel_size=3, stride=1, padding=1,
                             dilation=1, key=k_mod2)
    out2 = jax.block_until_ready(mod2(x))
    ref2 = jax.block_until_ready(_reference(mod2, x))
    assert out2.shape == (N, Cout, H, W), out2.shape
    assert jnp.allclose(out2.astype(jnp.float32), ref2,
                        atol=6e-2, rtol=6e-2), float(
        jnp.max(jnp.abs(out2.astype(jnp.float32) - ref2)))

    print("KERNEL_OK")
</pallas_src>

<mosaic_0001>
module attributes {stable_mosaic.version = 11 : i64} {
  func.func @_conv_bn_relu_kernel(%arg0: i32, %arg1: i32, %arg2: i32, %arg3: memref<512x4xbf16, #tpu.memory_space<vmem>>, %arg4: memref<4x128xbf16, #tpu.memory_space<vmem>>, %arg5: memref<1x128xf32, #tpu.memory_space<vmem>>, %arg6: memref<512x128xbf16, #tpu.memory_space<vmem>>, %arg7: memref<512x128xf32, #tpu.memory_space<vmem>>) attributes {dimension_semantics = [#tpu.dimension_semantics<parallel>, #tpu.dimension_semantics<parallel>, #tpu.dimension_semantics<arbitrary>], iteration_bounds = array<i64: 1, 1, 1>, scalar_prefetch = 0 : i64, scratch_operands = 1 : i64, tpu.core_type = #tpu.core_type<tc>, window_params = [{transform_indices = @transform_0, window_bounds = array<i64: 512, 4>}, {transform_indices = @transform_1, window_bounds = array<i64: 4, 128>}, {transform_indices = @transform_2, window_bounds = array<i64: 1, 128>}, {transform_indices = @transform_3, window_bounds = array<i64: 512, 128>}]} {
    %c0_i32 = arith.constant 0 : i32
    %0 = arith.cmpi eq, %arg2, %c0_i32 : i32
    %1 = arith.extui %0 : i1 to i32
    %c0_i32_0 = arith.constant 0 : i32
    %2 = arith.cmpi ne, %1, %c0_i32_0 : i32
    scf.if %2 {
      %cst_10 = arith.constant 0.000000e+00 : f32
      %12 = vector.broadcast %cst_10 : f32 to vector<512x128xf32>
      %c0_11 = arith.constant 0 : index
      %c0_12 = arith.constant 0 : index
      %13 = vector.load %arg7[%c0_11, %c0_12] : memref<512x128xf32, #tpu.memory_space<vmem>>, vector<512x128xf32>
      tpu.vector_store %arg7[%c0_11, %c0_12], %12 {strides = array<i32>} : memref<512x128xf32, #tpu.memory_space<vmem>>, vector<512x128xf32>,
    } else {
    }
    %c0 = arith.constant 0 : index
    %c0_1 = arith.constant 0 : index
    %3 = vector.load %arg7[%c0, %c0_1] : memref<512x128xf32, #tpu.memory_space<vmem>>, vector<512x128xf32>
    %c0_2 = arith.constant 0 : index
    %c0_3 = arith.constant 0 : index
    %4 = vector.load %arg3[%c0_2, %c0_3] : memref<512x4xbf16, #tpu.memory_space<vmem>>, vector<512x4xbf16>
    %c0_4 = arith.constant 0 : index
    %c0_5 = arith.constant 0 : index
    %5 = vector.load %arg4[%c0_4, %c0_5] : memref<4x128xbf16, #tpu.memory_space<vmem>>, vector<4x128xbf16>
    %cst = arith.constant dense<0.000000e+00> : vector<512x128xf32>
    %6 = tpu.matmul %4, %5, %cst {dimension_numbers = #tpu.dot_dimension_numbers<[1], [0], [0], [1], [0, 0, 1, 1], [], []>} : vector<512x4xbf16>, vector<4x128xbf16>, vector<512x128xf32> -> vector<512x128xf32>
    %7 = arith.addf %3, %6 : vector<512x128xf32>
    %c0_6 = arith.constant 0 : index
    %c0_7 = arith.constant 0 : index
    %8 = vector.load %arg7[%c0_6, %c0_7] : memref<512x128xf32, #tpu.memory_space<vmem>>, vector<512x128xf32>
    tpu.vector_store %arg7[%c0_6, %c0_7], %7 {strides = array<i32>} : memref<512x128xf32, #tpu.memory_space<vmem>>, vector<512x128xf32>,
    %c0_i32_8 = arith.constant 0 : i32
    %9 = arith.cmpi eq, %arg2, %c0_i32_8 : i32
    %10 = arith.extui %9 : i1 to i32
    %c0_i32_9 = arith.constant 0 : i32
    %11 = arith.cmpi ne, %10, %c0_i32_9 : i32
    scf.if %11 {
      %c0_10 = arith.constant 0 : index
      %c0_11 = arith.constant 0 : index
      %12 = vector.load %arg7[%c0_10, %c0_11] : memref<512x128xf32, #tpu.memory_space<vmem>>, vector<512x128xf32>
      %c0_12 = arith.constant 0 : index
      %c0_13 = arith.constant 0 : index
      %13 = vector.load %arg5[%c0_12, %c0_13] : memref<1x128xf32, #tpu.memory_space<vmem>>, vector<1x128xf32>
      %14 = vector.broadcast %13 : vector<1x128xf32> to vector<512x128xf32>
      %15 = arith.addf %12, %14 : vector<512x128xf32>
      %cst_14 = arith.constant 0.000000e+00 : f32
      %16 = vector.broadcast %cst_14 : f32 to vector<512x128xf32>
      %17 = arith.maximumf %15, %16 : vector<512x128xf32>
      %18 = arith.truncf %17 : vector<512x128xf32> to vector<512x128xbf16>
      %c0_15 = arith.constant 0 : index
      %c0_16 = arith.constant 0 : index
      %19 = vector.load %arg6[%c0_15, %c0_16] : memref<512x128xbf16, #tpu.memory_space<vmem>>, vector<512x128xbf16>
      tpu.vector_store %arg6[%c0_15, %c0_16], %18 {strides = array<i32>} : memref<512x128xbf16, #tpu.memory_space<vmem>>, vector<512x128xbf16>,
    } else {
    }
    return
  }
  func.func @transform_0(%arg0: i32, %arg1: i32, %arg2: i32) -> (i32, i32) {
    %c0_i32 = arith.constant 0 : i32
    return %arg0, %arg2 : i32, i32
  }
  func.func @transform_1(%arg0: i32, %arg1: i32, %arg2: i32) -> (i32, i32) {
    %c0_i32 = arith.constant 0 : i32
    return %arg2, %arg1 : i32, i32
  }
  func.func @transform_2(%arg0: i32, %arg1: i32, %arg2: i32) -> (i32, i32) {
    %c0_i32 = arith.constant 0 : i32
    %c0_i32_0 = arith.constant 0 : i32
    return %c0_i32, %arg1 : i32, i32
  }
  func.func @transform_3(%arg0: i32, %arg1: i32, %arg2: i32) -> (i32, i32) {
    %c0_i32 = arith.constant 0 : i32
    return %arg0, %arg1 : i32, i32
  }
}

</mosaic_0001>

<llo_original>
// kernel: tpu_custom_call.1
$region0: #{tpu_custom_call.1}
  #allocation0 [shape = 'u32[]', space=smem, size = 0x4, offset = 0x4, fixed_abs, tag = 'smem constant byte address 0x4 - core index']
  #allocation1 [shape = 'u32[144,128]{1,0:T(1,128)}', space=vmem, size = 0x12000, scoped, tag = 'internal scratch']
  #allocation2 [shape = 'f32[512,128]{1,0:T(8,128)}', space=vmem, size = 0x40000, scoped, tag = 'scratch operand']
  %s0 = inlined_call_operand.vmem [shape: bf16[512,4], index: 0, kind: input, shape index: {}]
  %s1 = inlined_call_operand.vmem [shape: bf16[4,128], index: 1, kind: input, shape index: {}]
  %s2 = inlined_call_operand.vmem [shape: f32[1,128], index: 2, kind: input, shape index: {}]
  %s3 = inlined_call_operand.hbm [shape: bf16[512,128], index: 3, kind: output, shape index: {}]
  %s4 = sld [smem:[#allocation0]]
  $region30: #{tpu_custom_call.1} parent=0
    _
  %s6 = ssub.s32 1, %s4
  %s7 = scalar_select 0, %s6, %s4
  $region1: #{tpu_custom_call.1} parent=0
    #allocation3 [shape = 'u8[131072]{0}', space=vmem, size = 0x20000, scoped, tag = 'output window, operand 0, single buffered']
    #allocation4 [shape = 's32[1]{0}', space=sflag, size = 0x4, scoped, tag = 'scoped memory for tpu_custom_call.1']
    %8 = vsyncpa [#allocation4], 0
    // Predicated region
    $region2: #{tpu_custom_call.1} parent=1 // pred_check
      _
    $region3: #{tpu_custom_call.1} parent=1 // pred_check_branch
      %10 = sbr.rel (0) target = $region5
    $region4: #{tpu_custom_call.1} parent=1 // pred_region
      _
    $region5: #{tpu_custom_call.1} parent=1 // pred_fallthru
      _
    // Predicated region
    $region6: #{tpu_custom_call.1} parent=1 // pred_check
      _
    $region7: #{tpu_custom_call.1} parent=1 // pred_check_branch
      %12 = sbr.rel (0) target = $region9
    $region8: #{tpu_custom_call.1} parent=1 // pred_region
      _
    $region9: #{tpu_custom_call.1} parent=1 // pred_fallthru
      _
    // Predicated region
    $region10: #{tpu_custom_call.1} parent=1 // pred_check
      _
    $region11: #{tpu_custom_call.1} parent=1 // pred_check_branch
      %14 = sbr.rel (0) target = $region13
    $region12: #{tpu_custom_call.1} parent=1 // pred_region
      _
    $region13: #{tpu_custom_call.1} parent=1 // pred_fallthru
      _
    %p16 = scmp.eq.s32.totalorder 0, 0
    // Predicated region
    $region14: #{tpu_custom_call.1} parent=1 // pred_check
      %p17 = pneg %p16
    $region15: #{tpu_custom_call.1} parent=1 // pred_check_branch
      %19 = sbr.rel (%p17) target = $region17
    $region16: #{tpu_custom_call.1} parent=1 // pred_region
      %20 = vst [vmem:[#allocation2] sm:$0xff] 0.0
      %21 = vst [vmem:[#allocation2 + $0x8] sm:$0xff] 0.0
      %22 = vst [vmem:[#allocation2 + $0x10] sm:$0xff] 0.0
      %23 = vst [vmem:[#allocation2 + $0x18] sm:$0xff] 0.0
      %24 = vst [vmem:[#allocation2 + $0x20] sm:$0xff] 0.0
      %25 = vst [vmem:[#allocation2 + $0x28] sm:$0xff] 0.0
      %26 = vst [vmem:[#allocation2 + $0x30] sm:$0xff] 0.0
      %27 = vst [vmem:[#allocation2 + $0x38] sm:$0xff] 0.0
      %28 = vst [vmem:[#allocation2 + $0x40] sm:$0xff] 0.0
      %29 = vst [vmem:[#allocation2 + $0x48] sm:$0xff] 0.0
      %30 = vst [vmem:[#allocation2 + $0x50] sm:$0xff] 0.0
      %31 = vst [vmem:[#allocation2 + $0x58] sm:$0xff] 0.0
      %32 = vst [vmem:[#allocation2 + $0x60] sm:$0xff] 0.0
      %33 = vst [vmem:[#allocation2 + $0x68] sm:$0xff] 0.0
      %34 = vst [vmem:[#allocation2 + $0x70] sm:$0xff] 0.0
      %35 = vst [vmem:[#allocation2 + $0x78] sm:$0xff] 0.0
      %36 = vst [vmem:[#allocation2 + $0x80] sm:$0xff] 0.0
      %37 = vst [vmem:[#allocation2 + $0x88] sm:$0xff] 0.0
      %38 = vst [vmem:[#allocation2 + $0x90] sm:$0xff] 0.0
      %39 = vst [vmem:[#allocation2 + $0x98] sm:$0xff] 0.0
      %40 = vst [vmem:[#allocation2 + $0xa0] sm:$0xff] 0.0
      %41 = vst [vmem:[#allocation2 + $0xa8] sm:$0xff] 0.0
      %42 = vst [vmem:[#allocation2 + $0xb0] sm:$0xff] 0.0
      %43 = vst [vmem:[#allocation2 + $0xb8] sm:$0xff] 0.0
      %44 = vst [vmem:[#allocation2 + $0xc0] sm:$0xff] 0.0
      %45 = vst [vmem:[#allocation2 + $0xc8] sm:$0xff] 0.0
      %46 = vst [vmem:[#allocation2 + $0xd0] sm:$0xff] 0.0
      %47 = vst [vmem:[#allocation2 + $0xd8] sm:$0xff] 0.0
      %48 = vst [vmem:[#allocation2 + $0xe0] sm:$0xff] 0.0
      %49 = vst [vmem:[#allocation2 + $0xe8] sm:$0xff] 0.0
      %50 = vst [vmem:[#allocation2 + $0xf0] sm:$0xff] 0.0
      %51 = vst [vmem:[#allocation2 + $0xf8] sm:$0xff] 0.0
      %52 = vst [vmem:[#allocation2 + $0x100] sm:$0xff] 0.0
      %53 = vst [vmem:[#allocation2 + $0x108] sm:$0xff] 0.0
      %54 = vst [vmem:[#allocation2 + $0x110] sm:$0xff] 0.0
      %55 = vst [vmem:[#allocation2 + $0x118] sm:$0xff] 0.0
      %56 = vst [vmem:[#allocation2 + $0x120] sm:$0xff] 0.0
      %57 = vst [vmem:[#allocation2 + $0x128] sm:$0xff] 0.0
      %58 = vst [vmem:[#allocation2 + $0x130] sm:$0xff] 0.0
      %59 = vst [vmem:[#allocation2 + $0x138] sm:$0xff] 0.0
      %60 = vst [vmem:[#allocation2 + $0x140] sm:$0xff] 0.0
      %61 = vst [vmem:[#allocation2 + $0x148] sm:$0xff] 0.0
      %62 = vst [vmem:[#allocation2 + $0x150] sm:$0xff] 0.0
      %63 = vst [vmem:[#allocation2 + $0x158] sm:$0xff] 0.0
      %64 = vst [vmem:[#allocation2 + $0x160] sm:$0xff] 0.0
      %65 = vst [vmem:[#allocation2 + $0x168] sm:$0xff] 0.0
      %66 = vst [vmem:[#allocation2 + $0x170] sm:$0xff] 0.0
      %67 = vst [vmem:[#allocation2 + $0x178] sm:$0xff] 0.0
      %68 = vst [vmem:[#allocation2 + $0x180] sm:$0xff] 0.0
      %69 = vst [vmem:[#allocation2 + $0x188] sm:$0xff] 0.0
      %70 = vst [vmem:[#allocation2 + $0x190] sm:$0xff] 0.0
      %71 = vst [vmem:[#allocation2 + $0x198] sm:$0xff] 0.0
      %72 = vst [vmem:[#allocation2 + $0x1a0] sm:$0xff] 0.0
      %73 = vst [vmem:[#allocation2 + $0x1a8] sm:$0xff] 0.0
      %74 = vst [vmem:[#allocation2 + $0x1b0] sm:$0xff] 0.0
      %75 = vst [vmem:[#allocation2 + $0x1b8] sm:$0xff] 0.0
      %76 = vst [vmem:[#allocation2 + $0x1c0] sm:$0xff] 0.0
      %77 = vst [vmem:[#allocation2 + $0x1c8] sm:$0xff] 0.0
      %78 = vst [vmem:[#allocation2 + $0x1d0] sm:$0xff] 0.0
      %79 = vst [vmem:[#allocation2 + $0x1d8] sm:$0xff] 0.0
      %80 = vst [vmem:[#allocation2 + $0x1e0] sm:$0xff] 0.0
      %81 = vst [vmem:[#allocation2 + $0x1e8] sm:$0xff] 0.0
      %82 = vst [vmem:[#allocation2 + $0x1f0] sm:$0xff] 0.0
      %83 = vst [vmem:[#allocation2 + $0x1f8] sm:$0xff] 0.0
    $region17: #{tpu_custom_call.1} parent=1 // pred_fallthru
      _
    %v84 = vld [vmem:[#allocation2] sm:$0xff]
    %v85 = vld [vmem:[#allocation2 + $0x8] sm:$0xff]
    %v86 = vld [vmem:[#allocation2 + $0x10] sm:$0xff]
    %v87 = vld [vmem:[#allocation2 + $0x18] sm:$0xff]
    %v88 = vld [vmem:[#allocation2 + $0x20] sm:$0xff]
    %v89 = vld [vmem:[#allocation2 + $0x28] sm:$0xff]
    %v90 = vld [vmem:[#allocation2 + $0x30] sm:$0xff]
    %v91 = vld [vmem:[#allocation2 + $0x38] sm:$0xff]
    %v92 = vld [vmem:[#allocation2 + $0x40] sm:$0xff]
    %v93 = vld [vmem:[#allocation2 + $0x48] sm:$0xff]
    %v94 = vld [vmem:[#allocation2 + $0x50] sm:$0xff]
    %v95 = vld [vmem:[#allocation2 + $0x58] sm:$0xff]
    %v96 = vld [vmem:[#allocation2 + $0x60] sm:$0xff]
    %v97 = vld [vmem:[#allocation2 + $0x68] sm:$0xff]
    %v98 = vld [vmem:[#allocation2 + $0x70] sm:$0xff]
    %v99 = vld [vmem:[#allocation2 + $0x78] sm:$0xff]
    %v100 = vld [vmem:[#allocation2 + $0x80] sm:$0xff]
    %v101 = vld [vmem:[#allocation2 + $0x88] sm:$0xff]
    %v102 = vld [vmem:[#allocation2 + $0x90] sm:$0xff]
    %v103 = vld [vmem:[#allocation2 + $0x98] sm:$0xff]
    %v104 = vld [vmem:[#allocation2 + $0xa0] sm:$0xff]
    %v105 = vld [vmem:[#allocation2 + $0xa8] sm:$0xff]
    %v106 = vld [vmem:[#allocation2 + $0xb0] sm:$0xff]
    %v107 = vld [vmem:[#allocation2 + $0xb8] sm:$0xff]
    %v108 = vld [vmem:[#allocation2 + $0xc0] sm:$0xff]
    %v109 = vld [vmem:[#allocation2 + $0xc8] sm:$0xff]
    %v110 = vld [vmem:[#allocation2 + $0xd0] sm:$0xff]
    %v111 = vld [vmem:[#allocation2 + $0xd8] sm:$0xff]
    %v112 = vld [vmem:[#allocation2 + $0xe0] sm:$0xff]
    %v113 = vld [vmem:[#allocation2 + $0xe8] sm:$0xff]
    %v114 = vld [vmem:[#allocation2 + $0xf0] sm:$0xff]
    %v115 = vld [vmem:[#allocation2 + $0xf8] sm:$0xff]
    %v116 = vld [vmem:[#allocation2 + $0x100] sm:$0xff]
    %v117 = vld [vmem:[#allocation2 + $0x108] sm:$0xff]
    %v118 = vld [vmem:[#allocation2 + $0x110] sm:$0xff]
    %v119 = vld [vmem:[#allocation2 + $0x118] sm:$0xff]
    %v120 = vld [vmem:[#allocation2 + $0x120] sm:$0xff]
    %v121 = vld [vmem:[#allocation2 + $0x128] sm:$0xff]
    %v122 = vld [vmem:[#allocation2 + $0x130] sm:$0xff]
    %v123 = vld [vmem:[#allocation2 + $0x138] sm:$0xff]
    %v124 = vld [vmem:[#allocation2 + $0x140] sm:$0xff]
    %v125 = vld [vmem:[#allocation2 + $0x148] sm:$0xff]
    %v126 = vld [vmem:[#allocation2 + $0x150] sm:$0xff]
    %v127 = vld [vmem:[#allocation2 + $0x158] sm:$0xff]
    %v128 = vld [vmem:[#allocation2 + $0x160] sm:$0xff]
    %v129 = vld [vmem:[#allocation2 + $0x168] sm:$0xff]
    %v130 = vld [vmem:[#allocation2 + $0x170] sm:$0xff]
    %v131 = vld [vmem:[#allocation2 + $0x178] sm:$0xff]
    %v132 = vld [vmem:[#allocation2 + $0x180] sm:$0xff]
    %v133 = vld [vmem:[#allocation2 + $0x188] sm:$0xff]
    %v134 = vld [vmem:[#allocation2 + $0x190] sm:$0xff]
    %v135 = vld [vmem:[#allocation2 + $0x198] sm:$0xff]
    %v136 = vld [vmem:[#allocation2 + $0x1a0] sm:$0xff]
    %v137 = vld [vmem:[#allocation2 + $0x1a8] sm:$0xff]
    %v138 = vld [vmem:[#allocation2 + $0x1b0] sm:$0xff]
    %v139 = vld [vmem:[#allocation2 + $0x1b8] sm:$0xff]
    %v140 = vld [vmem:[#allocation2 + $0x1c0] sm:$0xff]
    %v141 = vld [vmem:[#allocation2 + $0x1c8] sm:$0xff]
    %v142 = vld [vmem:[#allocation2 + $0x1d0] sm:$0xff]
    %v143 = vld [vmem:[#allocation2 + $0x1d8] sm:$0xff]
    %v144 = vld [vmem:[#allocation2 + $0x1e0] sm:$0xff]
    %v145 = vld [vmem:[#allocation2 + $0x1e8] sm:$0xff]
    %v146 = vld [vmem:[#allocation2 + $0x1f0] sm:$0xff]
    %v147 = vld [vmem:[#allocation2 + $0x1f8] sm:$0xff]
    %v148 = vld [vmem:[%s0] sm:$0xf]
    %v149 = vld [vmem:[%s0 + $0x4] sm:$0xf]
    %v150 = vld [vmem:[%s0 + $0x8] sm:$0xf]
    %v151 = vld [vmem:[%s0 + $0xc] sm:$0xf]
    %v152 = vld [vmem:[%s0 + $0x10] sm:$0xf]
    %v153 = vld [vmem:[%s0 + $0x14] sm:$0xf]
    %v154 = vld [vmem:[%s0 + $0x18] sm:$0xf]
    %v155 = vld [vmem:[%s0 + $0x1c] sm:$0xf]
    %v156 = vld [vmem:[%s0 + $0x20] sm:$0xf]
    %v157 = vld [vmem:[%s0 + $0x24] sm:$0xf]
    %v158 = vld [vmem:[%s0 + $0x28] sm:$0xf]
    %v159 = vld [vmem:[%s0 + $0x2c] sm:$0xf]
    %v160 = vld [vmem:[%s0 + $0x30] sm:$0xf]
    %v161 = vld [vmem:[%s0 + $0x34] sm:$0xf]
    %v162 = vld [vmem:[%s0 + $0x38] sm:$0xf]
    %v163 = vld [vmem:[%s0 + $0x3c] sm:$0xf]
    %v164 = vld [vmem:[%s0 + $0x40] sm:$0xf]
    %v165 = vld [vmem:[%s0 + $0x44] sm:$0xf]
    %v166 = vld [vmem:[%s0 + $0x48] sm:$0xf]
    %v167 = vld [vmem:[%s0 + $0x4c] sm:$0xf]
    %v168 = vld [vmem:[%s0 + $0x50] sm:$0xf]
    %v169 = vld [vmem:[%s0 + $0x54] sm:$0xf]
    %v170 = vld [vmem:[%s0 + $0x58] sm:$0xf]
    %v171 = vld [vmem:[%s0 + $0x5c] sm:$0xf]
    %v172 = vld [vmem:[%s0 + $0x60] sm:$0xf]
    %v173 = vld [vmem:[%s0 + $0x64] sm:$0xf]
    %v174 = vld [vmem:[%s0 + $0x68] sm:$0xf]
    %v175 = vld [vmem:[%s0 + $0x6c] sm:$0xf]
    %v176 = vld [vmem:[%s0 + $0x70] sm:$0xf]
    %v177 = vld [vmem:[%s0 + $0x74] sm:$0xf]
    %v178 = vld [vmem:[%s0 + $0x78] sm:$0xf]
    %v179 = vld [vmem:[%s0 + $0x7c] sm:$0xf]
    %v180 = vld [vmem:[%s0 + $0x80] sm:$0xf]
    %v181 = vld [vmem:[%s0 + $0x84] sm:$0xf]
    %v182 = vld [vmem:[%s0 + $0x88] sm:$0xf]
    %v183 = vld [vmem:[%s0 + $0x8c] sm:$0xf]
    %v184 = vld [vmem:[%s0 + $0x90] sm:$0xf]
    %v185 = vld [vmem:[%s0 + $0x94] sm:$0xf]
    %v186 = vld [vmem:[%s0 + $0x98] sm:$0xf]
    %v187 = vld [vmem:[%s0 + $0x9c] sm:$0xf]
    %v188 = vld [vmem:[%s0 + $0xa0] sm:$0xf]
    %v189 = vld [vmem:[%s0 + $0xa4] sm:$0xf]
    %v190 = vld [vmem:[%s0 + $0xa8] sm:$0xf]
    %v191 = vld [vmem:[%s0 + $0xac] sm:$0xf]
    %v192 = vld [vmem:[%s0 + $0xb0] sm:$0xf]
    %v193 = vld [vmem:[%s0 + $0xb4] sm:$0xf]
    %v194 = vld [vmem:[%s0 + $0xb8] sm:$0xf]
    %v195 = vld [vmem:[%s0 + $0xbc] sm:$0xf]
    %v196 = vld [vmem:[%s0 + $0xc0] sm:$0xf]
    %v197 = vld [vmem:[%s0 + $0xc4] sm:$0xf]
    %v198 = vld [vmem:[%s0 + $0xc8] sm:$0xf]
    %v199 = vld [vmem:[%s0 + $0xcc] sm:$0xf]
    %v200 = vld [vmem:[%s0 + $0xd0] sm:$0xf]
    %v201 = vld [vmem:[%s0 + $0xd4] sm:$0xf]
    %v202 = vld [vmem:[%s0 + $0xd8] sm:$0xf]
    %v203 = vld [vmem:[%s0 + $0xdc] sm:$0xf]
    %v204 = vld [vmem:[%s0 + $0xe0] sm:$0xf]
    %v205 = vld [vmem:[%s0 + $0xe4] sm:$0xf]
    %v206 = vld [vmem:[%s0 + $0xe8] sm:$0xf]
    %v207 = vld [vmem:[%s0 + $0xec] sm:$0xf]
    %v208 = vld [vmem:[%s0 + $0xf0] sm:$0xf]
    %v209 = vld [vmem:[%s0 + $0xf4] sm:$0xf]
    %v210 = vld [vmem:[%s0 + $0xf8] sm:$0xf]
    %v211 = vld [vmem:[%s0 + $0xfc] sm:$0xf]
    %v212 = vld [vmem:[%s1] sm:$0x3]
    %v277 = vunpack.c.l.b16 %v148
    %v278 = vunpack.c.l.b16 %v149
    %v279 = vunpack.c.l.b16 %v150
    %v280 = vunpack.c.l.b16 %v151
    %v281 = vunpack.c.l.b16 %v152
    %v282 = vunpack.c.l.b16 %v153
    %v283 = vunpack.c.l.b16 %v154
    %v284 = vunpack.c.l.b16 %v155
    %v285 = vunpack.c.l.b16 %v156
    %v286 = vunpack.c.l.b16 %v157
    %v287 = vunpack.c.l.b16 %v158
    %v288 = vunpack.c.l.b16 %v159
    %v289 = vunpack.c.l.b16 %v160
    %v290 = vunpack.c.l.b16 %v161
    %v291 = vunpack.c.l.b16 %v162
    %v292 = vunpack.c.l.b16 %v163
    %v293 = vunpack.c.l.b16 %v164
    %v294 = vunpack.c.l.b16 %v165
    %v295 = vunpack.c.l.b16 %v166
    %v296 = vunpack.c.l.b16 %v167
    %v297 = vunpack.c.l.b16 %v168
    %v298 = vunpack.c.l.b16 %v169
    %v299 = vunpack.c.l.b16 %v170
    %v300 = vunpack.c.l.b16 %v171
    %v301 = vunpack.c.l.b16 %v172
    %v302 = vunpack.c.l.b16 %v173
    %v303 = vunpack.c.l.b16 %v174
    %v304 = vunpack.c.l.b16 %v175
    %v305 = vunpack.c.l.b16 %v176
    %v306 = vunpack.c.l.b16 %v177
    %v307 = vunpack.c.l.b16 %v178
    %v308 = vunpack.c.l.b16 %v179
    %v309 = vunpack.c.l.b16 %v180
    %v310 = vunpack.c.l.b16 %v181
    %v311 = vunpack.c.l.b16 %v182
    %v312 = vunpack.c.l.b16 %v183
    %v313 = vunpack.c.l.b16 %v184
    %v314 = vunpack.c.l.b16 %v185
    %v315 = vunpack.c.l.b16 %v186
    %v316 = vunpack.c.l.b16 %v187
    %v317 = vunpack.c.l.b16 %v188
    %v318 = vunpack.c.l.b16 %v189
    %v319 = vunpack.c.l.b16 %v190
    %v320 = vunpack.c.l.b16 %v191
    %v321 = vunpack.c.l.b16 %v192
    %v322 = vunpack.c.l.b16 %v193
    %v323 = vunpack.c.l.b16 %v194
    %v324 = vunpack.c.l.b16 %v195
    %v325 = vunpack.c.l.b16 %v196
    %v326 = vunpack.c.l.b16 %v197
    %v327 = vunpack.c.l.b16 %v198
    %v328 = vunpack.c.l.b16 %v199
    %v329 = vunpack.c.l.b16 %v200
    %v330 = vunpack.c.l.b16 %v201
    %v331 = vunpack.c.l.b16 %v202
    %v332 = vunpack.c.l.b16 %v203
    %v333 = vunpack.c.l.b16 %v204
    %v334 = vunpack.c.l.b16 %v205
    %v335 = vunpack.c.l.b16 %v206
    %v336 = vunpack.c.l.b16 %v207
    %v337 = vunpack.c.l.b16 %v208
    %v338 = vunpack.c.l.b16 %v209
    %v339 = vunpack.c.l.b16 %v210
    %v340 = vunpack.c.l.b16 %v211
    %v341 = vpack.c.b16 %v278, %v277
    %v342 = vpack.c.b16 %v280, %v279
    %v343 = vpack.c.b16 %v282, %v281
    %v344 = vpack.c.b16 %v284, %v283
    %v345 = vpack.c.b16 %v286, %v285
    %v346 = vpack.c.b16 %v288, %v287
    %v347 = vpack.c.b16 %v290, %v289
    %v348 = vpack.c.b16 %v292, %v291
    %v349 = vpack.c.b16 %v294, %v293
    %v350 = vpack.c.b16 %v296, %v295
    %v351 = vpack.c.b16 %v298, %v297
    %v352 = vpack.c.b16 %v300, %v299
    %v353 = vpack.c.b16 %v302, %v301
    %v354 = vpack.c.b16 %v304, %v303
    %v355 = vpack.c.b16 %v306, %v305
    %v356 = vpack.c.b16 %v308, %v307
    %v357 = vpack.c.b16 %v310, %v309
    %v358 = vpack.c.b16 %v312, %v311
    %v359 = vpack.c.b16 %v314, %v313
    %v360 = vpack.c.b16 %v316, %v315
    %v361 = vpack.c.b16 %v318, %v317
    %v362 = vpack.c.b16 %v320, %v319
    %v363 = vpack.c.b16 %v322, %v321
    %v364 = vpack.c.b16 %v324, %v323
    %v365 = vpack.c.b16 %v326, %v325
    %v366 = vpack.c.b16 %v328, %v327
    %v367 = vpack.c.b16 %v330, %v329
    %v368 = vpack.c.b16 %v332, %v331
    %v369 = vpack.c.b16 %v334, %v333
    %v370 = vpack.c.b16 %v336, %v335
    %v371 = vpack.c.b16 %v338, %v337
    %v372 = vpack.c.b16 %v340, %v339
    %vm373 = vcmask 31744
    %v375 = vsel %vm373, %v341, 0
    %v378 = vsel %vm373, %v342, 0
    %v381 = vsel %vm373, %v343, 0
    %v384 = vsel %vm373, %v344, 0
    %v387 = vsel %vm373, %v345, 0
    %v390 = vsel %vm373, %v346, 0
    %v393 = vsel %vm373, %v347, 0
    %v396 = vsel %vm373, %v348, 0
    %v399 = vsel %vm373, %v349, 0
    %v402 = vsel %vm373, %v350, 0
    %v405 = vsel %vm373, %v351, 0
    %v408 = vsel %vm373, %v352, 0
    %v411 = vsel %vm373, %v353, 0
    %v414 = vsel %vm373, %v354, 0
    %v417 = vsel %vm373, %v355, 0
    %v420 = vsel %vm373, %v356, 0
    %v423 = vsel %vm373, %v357, 0
    %v426 = vsel %vm373, %v358, 0
    %v429 = vsel %vm373, %v359, 0
    %v432 = vsel %vm373, %v360, 0
    %v435 = vsel %vm373, %v361, 0
    %v438 = vsel %vm373, %v362, 0
    %v441 = vsel %vm373, %v363, 0
    %v444 = vsel %vm373, %v364, 0
    %v447 = vsel %vm373, %v365, 0
    %v450 = vsel %vm373, %v366, 0
    %v453 = vsel %vm373, %v367, 0
    %v456 = vsel %vm373, %v368, 0
    %v459 = vsel %vm373, %v369, 0
    %v462 = vsel %vm373, %v370, 0
    %v465 = vsel %vm373, %v371, 0
    %v468 = vsel %vm373, %v372, 0
    %vm470 = vcmask 1041408
    %v472 = vsel %vm470, %v212, 0
    %474 = vmatprep.subr.bf16.mxu0 0
    %475 = vmatpush1.bf16.msra.mxu0 0
    %476 = vmatprep.subr.bf16.mxu0 0
    %477 = vmatpush1.bf16.msra.mxu0 0
    %478 = vmatprep.subr.bf16.mxu0 0
    %479 = vmatpush1.bf16.msra.mxu0 0
    %480 = vmatprep.subr.bf16.mxu0 0
    %481 = vmatpush1.bf16.msra.mxu0 0
    %482 = vmatprep.subr.bf16.mxu0 0
    %483 = vmatpush1.bf16.msra.mxu0 0
    %484 = vmatprep.subr.bf16.mxu0 0
    %485 = vmatpush1.bf16.msra.mxu0 0
    %486 = vmatprep.subr.bf16.mxu0 0
    %487 = vmatpush1.bf16.msra.mxu0 0
    %488 = vmatprep.subr.bf16.mxu0 0
    %489 = vmatpush1.bf16.msra.mxu0 %v472
    %490 = vmatprep.subr.bf16.mxu0 0
    %491 = vmatpush2.bf16.msra.mxu0 0
    %492 = vmatprep.subr.bf16.mxu0 0
    %493 = vmatpush2.bf16.msra.mxu0 0
    %494 = vmatprep.subr.bf16.mxu0 0
    %495 = vmatpush2.bf16.msra.mxu0 0
    %496 = vmatprep.subr.bf16.mxu0 0
    %497 = vmatpush2.bf16.msra.mxu0 0
    %498 = vmatprep.subr.bf16.mxu0 0
    %499 = vmatpush2.bf16.msra.mxu0 0
    %500 = vmatprep.subr.bf16.mxu0 0
    %501 = vmatpush2.bf16.msra.mxu0 0
    %502 = vmatprep.subr.bf16.mxu0 0
    %503 = vmatpush2.bf16.msra.mxu0 0
    %504 = vmatprep.subr.bf16.mxu0 0
    %505 = vmatpush2.bf16.msra.mxu0 0
    %506 = vmatprep.mubr.bf16.mxu0 0
    %507 = vmatmul.mubr.bf16.gmra.mxu0 %v375
    %v508 = vpop.f32.mrf.mxu0
    %v509 = vadd.f32 0.0, %v508
    %v510 = vpop.f32.mrf.mxu0
    %v511 = vpop.f32.mrf.mxu0
    %v512 = vadd.f32 0.0, %v511
    %v513 = vpop.f32.mrf.mxu0
    %514 = vmatprep.mubr.bf16.mxu0 0
    %515 = vmatmul.mubr.bf16.gmra.mxu0 %v378
    %v516 = vpop.f32.mrf.mxu0
    %v517 = vadd.f32 0.0, %v516
    %v518 = vpop.f32.mrf.mxu0
    %v519 = vpop.f32.mrf.mxu0
    %v520 = vadd.f32 0.0, %v519
    %v521 = vpop.f32.mrf.mxu0
    %522 = vmatprep.mubr.bf16.mxu0 0
    %523 = vmatmul.mubr.bf16.gmra.mxu0 %v381
    %v524 = vpop.f32.mrf.mxu0
    %v525 = vadd.f32 0.0, %v524
    %v526 = vpop.f32.mrf.mxu0
    %v527 = vpop.f32.mrf.mxu0
    %v528 = vadd.f32 0.0, %v527
    %v529 = vpop.f32.mrf.mxu0
    %530 = vmatprep.mubr.bf16.mxu0 0
    %531 = vmatmul.mubr.bf16.gmra.mxu0 %v384
    %v532 = vpop.f32.mrf.mxu0
    %v533 = vadd.f32 0.0, %v532
    %v534 = vpop.f32.mrf.mxu0
    %v535 = vpop.f32.mrf.mxu0
    %v536 = vadd.f32 0.0, %v535
    %v537 = vpop.f32.mrf.mxu0
    %538 = vmatprep.mubr.bf16.mxu0 0
    %539 = vmatmul.mubr.bf16.gmra.mxu0 %v387
    %v540 = vpop.f32.mrf.mxu0
    %v541 = vadd.f32 0.0, %v540
    %v542 = vpop.f32.mrf.mxu0
    %v543 = vpop.f32.mrf.mxu0
    %v544 = vadd.f32 0.0, %v543
    %v545 = vpop.f32.mrf.mxu0
    %546 = vmatprep.mubr.bf16.mxu0 0
    %547 = vmatmul.mubr.bf16.gmra.mxu0 %v390
    %v548 = vpop.f32.mrf.mxu0
    %v549 = vadd.f32 0.0, %v548
    %v550 = vpop.f32.mrf.mxu0
    %v551 = vpop.f32.mrf.mxu0
    %v552 = vadd.f32 0.0, %v551
    %v553 = vpop.f32.mrf.mxu0
    %554 = vmatprep.mubr.bf16.mxu0 0
    %555 = vmatmul.mubr.bf16.gmra.mxu0 %v393
    %v556 = vpop.f32.mrf.mxu0
    %v557 = vadd.f32 0.0, %v556
    %v558 = vpop.f32.mrf.mxu0
    %v559 = vpop.f32.mrf.mxu0
    %v560 = vadd.f32 0.0, %v559
    %v561 = vpop.f32.mrf.mxu0
    %562 = vmatprep.mubr.bf16.mxu0 0
    %563 = vmatmul.mubr.bf16.gmra.mxu0 %v396
    %v564 = vpop.f32.mrf.mxu0
    %v565 = vadd.f32 0.0, %v564
    %v566 = vpop.f32.mrf.mxu0
    %v567 = vpop.f32.mrf.mxu0
    %v568 = vadd.f32 0.0, %v567
    %v569 = vpop.f32.mrf.mxu0
    %570 = vmatprep.mubr.bf16.mxu0 0
    %571 = vmatmul.mubr.bf16.gmra.mxu0 %v399
    %v572 = vpop.f32.mrf.mxu0
    %v573 = vadd.f32 0.0, %v572
    %v574 = vpop.f32.mrf.mxu0
    %v575 = vpop.f32.mrf.mxu0
    %v576 = vadd.f32 0.0, %v575
    %v577 = vpop.f32.mrf.mxu0
    %578 = vmatprep.mubr.bf16.mxu0 0
    %579 = vmatmul.mubr.bf16.gmra.mxu0 %v402
    %v580 = vpop.f32.mrf.mxu0
    %v581 = vadd.f32 0.0, %v580
    %v582 = vpop.f32.mrf.mxu0
    %v583 = vpop.f32.mrf.mxu0
    %v584 = vadd.f32 0.0, %v583
    %v585 = vpop.f32.mrf.mxu0
    %586 = vmatprep.mubr.bf16.mxu0 0
    %587 = vmatmul.mubr.bf16.gmra.mxu0 %v405
    %v588 = vpop.f32.mrf.mxu0
    %v589 = vadd.f32 0.0, %v588
    %v590 = vpop.f32.mrf.mxu0
    %v591 = vpop.f32.mrf.mxu0
    %v592 = vadd.f32 0.0, %v591
    %v593 = vpop.f32.mrf.mxu0
    %594 = vmatprep.mubr.bf16.mxu0 0
    %595 = vmatmul.mubr.bf16.gmra.mxu0 %v408
    %v596 = vpop.f32.mrf.mxu0
    %v597 = vadd.f32 0.0, %v596
    %v598 = vpop.f32.mrf.mxu0
    %v599 = vpop.f32.mrf.mxu0
    %v600 = vadd.f32 0.0, %v599
    %v601 = vpop.f32.mrf.mxu0
    %602 = vmatprep.mubr.bf16.mxu0 0
    %603 = vmatmul.mubr.bf16.gmra.mxu0 %v411
    %v604 = vpop.f32.mrf.mxu0
    %v605 = vadd.f32 0.0, %v604
    %v606 = vpop.f32.mrf.mxu0
    %v607 = vpop.f32.mrf.mxu0
    %v608 = vadd.f32 0.0, %v607
    %v609 = vpop.f32.mrf.mxu0
    %610 = vmatprep.mubr.bf16.mxu0 0
    %611 = vmatmul.mubr.bf16.gmra.mxu0 %v414
    %v612 = vpop.f32.mrf.mxu0
    %v613 = vadd.f32 0.0, %v612
    %v614 = vpop.f32.mrf.mxu0
    %v615 = vpop.f32.mrf.mxu0
    %v616 = vadd.f32 0.0, %v615
    %v617 = vpop.f32.mrf.mxu0
    %618 = vmatprep.mubr.bf16.mxu0 0
    %619 = vmatmul.mubr.bf16.gmra.mxu0 %v417
    %v620 = vpop.f32.mrf.mxu0
    %v621 = vadd.f32 0.0, %v620
    %v622 = vpop.f32.mrf.mxu0
    %v623 = vpop.f32.mrf.mxu0
    %v624 = vadd.f32 0.0, %v623
    %v625 = vpop.f32.mrf.mxu0
    %626 = vmatprep.mubr.bf16.mxu0 0
    %627 = vmatmul.mubr.bf16.gmra.mxu0 %v420
    %v628 = vpop.f32.mrf.mxu0
    %v629 = vadd.f32 0.0, %v628
    %v630 = vpop.f32.mrf.mxu0
    %v631 = vpop.f32.mrf.mxu0
    %v632 = vadd.f32 0.0, %v631
    %v633 = vpop.f32.mrf.mxu0
    %634 = vmatprep.mubr.bf16.mxu0 0
    %635 = vmatmul.mubr.bf16.gmra.mxu0 %v423
    %v636 = vpop.f32.mrf.mxu0
    %v637 = vadd.f32 0.0, %v636
    %v638 = vpop.f32.mrf.mxu0
    %v639 = vpop.f32.mrf.mxu0
    %v640 = vadd.f32 0.0, %v639
    %v641 = vpop.f32.mrf.mxu0
    %642 = vmatprep.mubr.bf16.mxu0 0
    %643 = vmatmul.mubr.bf16.gmra.mxu0 %v426
    %v644 = vpop.f32.mrf.mxu0
    %v645 = vadd.f32 0.0, %v644
    %v646 = vpop.f32.mrf.mxu0
    %v647 = vpop.f32.mrf.mxu0
    %v648 = vadd.f32 0.0, %v647
    %v649 = vpop.f32.mrf.mxu0
    %650 = vmatprep.mubr.bf16.mxu0 0
    %651 = vmatmul.mubr.bf16.gmra.mxu0 %v429
    %v652 = vpop.f32.mrf.mxu0
    %v653 = vadd.f32 0.0, %v652
    %v654 = vpop.f32.mrf.mxu0
    %v655 = vpop.f32.mrf.mxu0
    %v656 = vadd.f32 0.0, %v655
    %v657 = vpop.f32.mrf.mxu0
    %658 = vmatprep.mubr.bf16.mxu0 0
    %659 = vmatmul.mubr.bf16.gmra.mxu0 %v432
    %v660 = vpop.f32.mrf.mxu0
    %v661 = vadd.f32 0.0, %v660
    %v662 = vpop.f32.mrf.mxu0
    %v663 = vpop.f32.mrf.mxu0
    %v664 = vadd.f32 0.0, %v663
    %v665 = vpop.f32.mrf.mxu0
    %666 = vmatprep.mubr.bf16.mxu0 0
    %667 = vmatmul.mubr.bf16.gmra.mxu0 %v435
    %v668 = vpop.f32.mrf.mxu0
    %v669 = vadd.f32 0.0, %v668
    %v670 = vpop.f32.mrf.mxu0
    %v671 = vpop.f32.mrf.mxu0
    %v672 = vadd.f32 0.0, %v671
    %v673 = vpop.f32.mrf.mxu0
    %674 = vmatprep.mubr.bf16.mxu0 0
    %675 = vmatmul.mubr.bf16.gmra.mxu0 %v438
    %v676 = vpop.f32.mrf.mxu0
    %v677 = vadd.f32 0.0, %v676
    %v678 = vpop.f32.mrf.mxu0
    %v679 = vpop.f32.mrf.mxu0
    %v680 = vadd.f32 0.0, %v679
    %v681 = vpop.f32.mrf.mxu0
    %682 = vmatprep.mubr.bf16.mxu0 0
    %683 = vmatmul.mubr.bf16.gmra.mxu0 %v441
    %v684 = vpop.f32.mrf.mxu0
    %v685 = vadd.f32 0.0, %v684
    %v686 = vpop.f32.mrf.mxu0
    %v687 = vpop.f32.mrf.mxu0
    %v688 = vadd.f32 0.0, %v687
    %v689 = vpop.f32.mrf.mxu0
    %690 = vmatprep.mubr.bf16.mxu0 0
    %691 = vmatmul.mubr.bf16.gmra.mxu0 %v444
    %v692 = vpop.f32.mrf.mxu0
    %v693 = vadd.f32 0.0, %v692
    %v694 = vpop.f32.mrf.mxu0
    %v695 = vpop.f32.mrf.mxu0
    %v696 = vadd.f32 0.0, %v695
    %v697 = vpop.f32.mrf.mxu0
    %698 = vmatprep.mubr.bf16.mxu0 0
    %699 = vmatmul.mubr.bf16.gmra.mxu0 %v447
    %v700 = vpop.f32.mrf.mxu0
    %v701 = vadd.f32 0.0, %v700
    %v702 = vpop.f32.mrf.mxu0
    %v703 = vpop.f32.mrf.mxu0
    %v704 = vadd.f32 0.0, %v703
    %v705 = vpop.f32.mrf.mxu0
    %706 = vmatprep.mubr.bf16.mxu0 0
    %707 = vmatmul.mubr.bf16.gmra.mxu0 %v450
    %v708 = vpop.f32.mrf.mxu0
    %v709 = vadd.f32 0.0, %v708
    %v710 = vpop.f32.mrf.mxu0
    %v711 = vpop.f32.mrf.mxu0
    %v712 = vadd.f32 0.0, %v711
    %v713 = vpop.f32.mrf.mxu0
    %714 = vmatprep.mubr.bf16.mxu0 0
    %715 = vmatmul.mubr.bf16.gmra.mxu0 %v453
    %v716 = vpop.f32.mrf.mxu0
    %v717 = vadd.f32 0.0, %v716
    %v718 = vpop.f32.mrf.mxu0
    %v719 = vpop.f32.mrf.mxu0
    %v720 = vadd.f32 0.0, %v719
    %v721 = vpop.f32.mrf.mxu0
    %722 = vmatprep.mubr.bf16.mxu0 0
    %723 = vmatmul.mubr.bf16.gmra.mxu0 %v456
    %v724 = vpop.f32.mrf.mxu0
    %v725 = vadd.f32 0.0, %v724
    %v726 = vpop.f32.mrf.mxu0
    %v727 = vpop.f32.mrf.mxu0
    %v728 = vadd.f32 0.0, %v727
    %v729 = vpop.f32.mrf.mxu0
    %730 = vmatprep.mubr.bf16.mxu0 0
    %731 = vmatmul.mubr.bf16.gmra.mxu0 %v459
    %v732 = vpop.f32.mrf.mxu0
    %v733 = vadd.f32 0.0, %v732
    %v734 = vpop.f32.mrf.mxu0
    %v735 = vpop.f32.mrf.mxu0
    %v736 = vadd.f32 0.0, %v735
    %v737 = vpop.f32.mrf.mxu0
    %738 = vmatprep.mubr.bf16.mxu0 0
    %739 = vmatmul.mubr.bf16.gmra.mxu0 %v462
    %v740 = vpop.f32.mrf.mxu0
    %v741 = vadd.f32 0.0, %v740
    %v742 = vpop.f32.mrf.mxu0
    %v743 = vpop.f32.mrf.mxu0
    %v744 = vadd.f32 0.0, %v743
    %v745 = vpop.f32.mrf.mxu0
    %746 = vmatprep.mubr.bf16.mxu0 0
    %747 = vmatmul.mubr.bf16.gmra.mxu0 %v465
    %v748 = vpop.f32.mrf.mxu0
    %v749 = vadd.f32 0.0, %v748
    %v750 = vpop.f32.mrf.mxu0
    %v751 = vpop.f32.mrf.mxu0
    %v752 = vadd.f32 0.0, %v751
    %v753 = vpop.f32.mrf.mxu0
    %754 = vmatprep.mubr.bf16.mxu0 0
    %755 = vmatmul.mubr.bf16.gmra.mxu0 %v468
    %v756 = vpop.f32.mrf.mxu0
    %v757 = vadd.f32 0.0, %v756
    %v758 = vpop.f32.mrf.mxu0
    %v759 = vpop.f32.mrf.mxu0
    %v760 = vadd.f32 0.0, %v759
    %v761 = vpop.f32.mrf.mxu0
    %762 = vdwg.mxu0
    %v763 = vadd.f32 %v84, %v509
    %v764 = vadd.f32 %v85, %v512
    %v765 = vadd.f32 %v86, %v517
    %v766 = vadd.f32 %v87, %v520
    %v767 = vadd.f32 %v88, %v525
    %v768 = vadd.f32 %v89, %v528
    %v769 = vadd.f32 %v90, %v533
    %v770 = vadd.f32 %v91, %v536
    %v771 = vadd.f32 %v92, %v541
    %v772 = vadd.f32 %v93, %v544
    %v773 = vadd.f32 %v94, %v549
    %v774 = vadd.f32 %v95, %v552
    %v775 = vadd.f32 %v96, %v557
    %v776 = vadd.f32 %v97, %v560
    %v777 = vadd.f32 %v98, %v565
    %v778 = vadd.f32 %v99, %v568
    %v779 = vadd.f32 %v100, %v573
    %v780 = vadd.f32 %v101, %v576
    %v781 = vadd.f32 %v102, %v581
    %v782 = vadd.f32 %v103, %v584
    %v783 = vadd.f32 %v104, %v589
    %v784 = vadd.f32 %v105, %v592
    %v785 = vadd.f32 %v106, %v597
    %v786 = vadd.f32 %v107, %v600
    %v787 = vadd.f32 %v108, %v605
    %v788 = vadd.f32 %v109, %v608
    %v789 = vadd.f32 %v110, %v613
    %v790 = vadd.f32 %v111, %v616
    %v791 = vadd.f32 %v112, %v621
    %v792 = vadd.f32 %v113, %v624
    %v793 = vadd.f32 %v114, %v629
    %v794 = vadd.f32 %v115, %v632
    %v795 = vadd.f32 %v116, %v637
    %v796 = vadd.f32 %v117, %v640
    %v797 = vadd.f32 %v118, %v645
    %v798 = vadd.f32 %v119, %v648
    %v799 = vadd.f32 %v120, %v653
    %v800 = vadd.f32 %v121, %v656
    %v801 = vadd.f32 %v122, %v661
    %v802 = vadd.f32 %v123, %v664
    %v803 = vadd.f32 %v124, %v669
    %v804 = vadd.f32 %v125, %v672
    %v805 = vadd.f32 %v126, %v677
    %v806 = vadd.f32 %v127, %v680
    %v807 = vadd.f32 %v128, %v685
    %v808 = vadd.f32 %v129, %v688
    %v809 = vadd.f32 %v130, %v693
    %v810 = vadd.f32 %v131, %v696
    %v811 = vadd.f32 %v132, %v701
    %v812 = vadd.f32 %v133, %v704
    %v813 = vadd.f32 %v134, %v709
    %v814 = vadd.f32 %v135, %v712
    %v815 = vadd.f32 %v136, %v717
    %v816 = vadd.f32 %v137, %v720
    %v817 = vadd.f32 %v138, %v725
    %v818 = vadd.f32 %v139, %v728
    %v819 = vadd.f32 %v140, %v733
    %v820 = vadd.f32 %v141, %v736
    %v821 = vadd.f32 %v142, %v741
    %v822 = vadd.f32 %v143, %v744
    %v823 = vadd.f32 %v144, %v749
    %v824 = vadd.f32 %v145, %v752
    %v825 = vadd.f32 %v146, %v757
    %v826 = vadd.f32 %v147, %v760
    %827 = vst [vmem:[#allocation2] sm:$0xff] %v763
    %828 = vst [vmem:[#allocation2 + $0x8] sm:$0xff] %v764
    %829 = vst [vmem:[#allocation2 + $0x10] sm:$0xff] %v765
    %830 = vst [vmem:[#allocation2 + $0x18] sm:$0xff] %v766
    %831 = vst [vmem:[#allocation2 + $0x20] sm:$0xff] %v767
    %832 = vst [vmem:[#allocation2 + $0x28] sm:$0xff] %v768
    %833 = vst [vmem:[#allocation2 + $0x30] sm:$0xff] %v769
    %834 = vst [vmem:[#allocation2 + $0x38] sm:$0xff] %v770
    %835 = vst [vmem:[#allocation2 + $0x40] sm:$0xff] %v771
    %836 = vst [vmem:[#allocation2 + $0x48] sm:$0xff] %v772
    %837 = vst [vmem:[#allocation2 + $0x50] sm:$0xff] %v773
    %838 = vst [vmem:[#allocation2 + $0x58] sm:$0xff] %v774
    %839 = vst [vmem:[#allocation2 + $0x60] sm:$0xff] %v775
    %840 = vst [vmem:[#allocation2 + $0x68] sm:$0xff] %v776
    %841 = vst [vmem:[#allocation2 + $0x70] sm:$0xff] %v777
    %842 = vst [vmem:[#allocation2 + $0x78] sm:$0xff] %v778
    %843 = vst [vmem:[#allocation2 + $0x80] sm:$0xff] %v779
    %844 = vst [vmem:[#allocation2 + $0x88] sm:$0xff] %v780
    %845 = vst [vmem:[#allocation2 + $0x90] sm:$0xff] %v781
    %846 = vst [vmem:[#allocation2 + $0x98] sm:$0xff] %v782
    %847 = vst [vmem:[#allocation2 + $0xa0] sm:$0xff] %v783
    %848 = vst [vmem:[#allocation2 + $0xa8] sm:$0xff] %v784
    %849 = vst [vmem:[#allocation2 + $0xb0] sm:$0xff] %v785
    %850 = vst [vmem:[#allocation2 + $0xb8] sm:$0xff] %v786
    %851 = vst [vmem:[#allocation2 + $0xc0] sm:$0xff] %v787
    %852 = vst [vmem:[#allocation2 + $0xc8] sm:$0xff] %v788
    %853 = vst [vmem:[#allocation2 + $0xd0] sm:$0xff] %v789
    %854 = vst [vmem:[#allocation2 + $0xd8] sm:$0xff] %v790
    %855 = vst [vmem:[#allocation2 + $0xe0] sm:$0xff] %v791
    %856 = vst [vmem:[#allocation2 + $0xe8] sm:$0xff] %v792
    %857 = vst [vmem:[#allocation2 + $0xf0] sm:$0xff] %v793
    %858 = vst [vmem:[#allocation2 + $0xf8] sm:$0xff] %v794
    %859 = vst [vmem:[#allocation2 + $0x100] sm:$0xff] %v795
    %860 = vst [vmem:[#allocation2 + $0x108] sm:$0xff] %v796
    %861 = vst [vmem:[#allocation2 + $0x110] sm:$0xff] %v797
    %862 = vst [vmem:[#allocation2 + $0x118] sm:$0xff] %v798
    %863 = vst [vmem:[#allocation2 + $0x120] sm:$0xff] %v799
    %864 = vst [vmem:[#allocation2 + $0x128] sm:$0xff] %v800
    %865 = vst [vmem:[#allocation2 + $0x130] sm:$0xff] %v801
    %866 = vst [vmem:[#allocation2 + $0x138] sm:$0xff] %v802
    %867 = vst [vmem:[#allocation2 + $0x140] sm:$0xff] %v803
    %868 = vst [vmem:[#allocation2 + $0x148] sm:$0xff] %v804
    %869 = vst [vmem:[#allocation2 + $0x150] sm:$0xff] %v805
    %870 = vst [vmem:[#allocation2 + $0x158] sm:$0xff] %v806
    %871 = vst [vmem:[#allocation2 + $0x160] sm:$0xff] %v807
    %872 = vst [vmem:[#allocation2 + $0x168] sm:$0xff] %v808
    %873 = vst [vmem:[#allocation2 + $0x170] sm:$0xff] %v809
    %874 = vst [vmem:[#allocation2 + $0x178] sm:$0xff] %v810
    %875 = vst [vmem:[#allocation2 + $0x180] sm:$0xff] %v811
    %876 = vst [vmem:[#allocation2 + $0x188] sm:$0xff] %v812
    %877 = vst [vmem:[#allocation2 + $0x190] sm:$0xff] %v813
    %878 = vst [vmem:[#allocation2 + $0x198] sm:$0xff] %v814
    %879 = vst [vmem:[#allocation2 + $0x1a0] sm:$0xff] %v815
    %880 = vst [vmem:[#allocation2 + $0x1a8] sm:$0xff] %v816
    %881 = vst [vmem:[#allocation2 + $0x1b0] sm:$0xff] %v817
    %882 = vst [vmem:[#allocation2 + $0x1b8] sm:$0xff] %v818
    %883 = vst [vmem:[#allocation2 + $0x1c0] sm:$0xff] %v819
    %884 = vst [vmem:[#allocation2 + $0x1c8] sm:$0xff] %v820
    %885 = vst [vmem:[#allocation2 + $0x1d0] sm:$0xff] %v821
    %886 = vst [vmem:[#allocation2 + $0x1d8] sm:$0xff] %v822
    %887 = vst [vmem:[#allocation2 + $0x1e0] sm:$0xff] %v823
    %888 = vst [vmem:[#allocation2 + $0x1e8] sm:$0xff] %v824
    %889 = vst [vmem:[#allocation2 + $0x1f0] sm:$0xff] %v825
    %890 = vst [vmem:[#allocation2 + $0x1f8] sm:$0xff] %v826
    // Predicated region
    $region18: #{tpu_custom_call.1} parent=1 // pred_check
      %p891 = pneg %p16
    $region19: #{tpu_custom_call.1} parent=1 // pred_check_branch
      %893 = sbr.rel (%p891) target = $region21
    $region20: #{tpu_custom_call.1} parent=1 // pred_region
      %v894 = vld [vmem:[#allocation2] sm:$0xff]
      %v895 = vld [vmem:[#allocation2 + $0x8] sm:$0xff]
      %v896 = vld [vmem:[#allocation2 + $0x10] sm:$0xff]
      %v897 = vld [vmem:[#allocation2 + $0x18] sm:$0xff]
      %v898 = vld [vmem:[#allocation2 + $0x20] sm:$0xff]
      %v899 = vld [vmem:[#allocation2 + $0x28] sm:$0xff]
      %v900 = vld [vmem:[#allocation2 + $0x30] sm:$0xff]
      %v901 = vld [vmem:[#allocation2 + $0x38] sm:$0xff]
      %v902 = vld [vmem:[#allocation2 + $0x40] sm:$0xff]
      %v903 = vld [vmem:[#allocation2 + $0x48] sm:$0xff]
      %v904 = vld [vmem:[#allocation2 + $0x50] sm:$0xff]
      %v905 = vld [vmem:[#allocation2 + $0x58] sm:$0xff]
      %v906 = vld [vmem:[#allocation2 + $0x60] sm:$0xff]
      %v907 = vld [vmem:[#allocation2 + $0x68] sm:$0xff]
      %v908 = vld [vmem:[#allocation2 + $0x70] sm:$0xff]
      %v909 = vld [vmem:[#allocation2 + $0x78] sm:$0xff]
      %v910 = vld [vmem:[#allocation2 + $0x80] sm:$0xff]
      %v911 = vld [vmem:[#allocation2 + $0x88] sm:$0xff]
      %v912 = vld [vmem:[#allocation2 + $0x90] sm:$0xff]
      %v913 = vld [vmem:[#allocation2 + $0x98] sm:$0xff]
      %v914 = vld [vmem:[#allocation2 + $0xa0] sm:$0xff]
      %v915 = vld [vmem:[#allocation2 + $0xa8] sm:$0xff]
      %v916 = vld [vmem:[#allocation2 + $0xb0] sm:$0xff]
      %v917 = vld [vmem:[#allocation2 + $0xb8] sm:$0xff]
      %v918 = vld [vmem:[#allocation2 + $0xc0] sm:$0xff]
      %v919 = vld [vmem:[#allocation2 + $0xc8] sm:$0xff]
      %v920 = vld [vmem:[#allocation2 + $0xd0] sm:$0xff]
      %v921 = vld [vmem:[#allocation2 + $0xd8] sm:$0xff]
      %v922 = vld [vmem:[#allocation2 + $0xe0] sm:$0xff]
      %v923 = vld [vmem:[#allocation2 + $0xe8] sm:$0xff]
      %v924 = vld [vmem:[#allocation2 + $0xf0] sm:$0xff]
      %v925 = vld [vmem:[#allocation2 + $0xf8] sm:$0xff]
      %v926 = vld [vmem:[#allocation2 + $0x100] sm:$0xff]
      %v927 = vld [vmem:[#allocation2 + $0x108] sm:$0xff]
      %v928 = vld [vmem:[#allocation2 + $0x110] sm:$0xff]
      %v929 = vld [vmem:[#allocation2 + $0x118] sm:$0xff]
      %v930 = vld [vmem:[#allocation2 + $0x120] sm:$0xff]
      %v931 = vld [vmem:[#allocation2 + $0x128] sm:$0xff]
      %v932 = vld [vmem:[#allocation2 + $0x130] sm:$0xff]
      %v933 = vld [vmem:[#allocation2 + $0x138] sm:$0xff]
      %v934 = vld [vmem:[#allocation2 + $0x140] sm:$0xff]
      %v935 = vld [vmem:[#allocation2 + $0x148] sm:$0xff]
      %v936 = vld [vmem:[#allocation2 + $0x150] sm:$0xff]
      %v937 = vld [vmem:[#allocation2 + $0x158] sm:$0xff]
      %v938 = vld [vmem:[#allocation2 + $0x160] sm:$0xff]
      %v939 = vld [vmem:[#allocation2 + $0x168] sm:$0xff]
      %v940 = vld [vmem:[#allocation2 + $0x170] sm:$0xff]
      %v941 = vld [vmem:[#allocation2 + $0x178] sm:$0xff]
      %v942 = vld [vmem:[#allocation2 + $0x180] sm:$0xff]
      %v943 = vld [vmem:[#allocation2 + $0x188] sm:$0xff]
      %v944 = vld [vmem:[#allocation2 + $0x190] sm:$0xff]
      %v945 = vld [vmem:[#allocation2 + $0x198] sm:$0xff]
      %v946 = vld [vmem:[#allocation2 + $0x1a0] sm:$0xff]
      %v947 = vld [vmem:[#allocation2 + $0x1a8] sm:$0xff]
      %v948 = vld [vmem:[#allocation2 + $0x1b0] sm:$0xff]
      %v949 = vld [vmem:[#allocation2 + $0x1b8] sm:$0xff]
      %v950 = vld [vmem:[#allocation2 + $0x1c0] sm:$0xff]
      %v951 = vld [vmem:[#allocation2 + $0x1c8] sm:$0xff]
      %v952 = vld [vmem:[#allocation2 + $0x1d0] sm:$0xff]
      %v953 = vld [vmem:[#allocation2 + $0x1d8] sm:$0xff]
      %v954 = vld [vmem:[#allocation2 + $0x1e0] sm:$0xff]
      %v955 = vld [vmem:[#allocation2 + $0x1e8] sm:$0xff]
      %v956 = vld [vmem:[#allocation2 + $0x1f0] sm:$0xff]
      %v957 = vld [vmem:[#allocation2 + $0x1f8] sm:$0xff]
      %v958 = vld [vmem:[%s2] sm:$0x1]
      %v960 = vlaneseq
      %v961 = vshrl.u32 %v960, 7
      %v962 = vsub.s32 0, %v961
      %v963 = vrot.slane %v958, %v962
      %v965 = vadd.f32 %v894, %v963
      %v966 = vadd.f32 %v895, %v963
      %v967 = vadd.f32 %v896, %v963
      %v968 = vadd.f32 %v897, %v963
      %v969 = vadd.f32 %v898, %v963
      %v970 = vadd.f32 %v899, %v963
      %v971 = vadd.f32 %v900, %v963
      %v972 = vadd.f32 %v901, %v963
      %v973 = vadd.f32 %v902, %v963
      %v974 = vadd.f32 %v903, %v963
      %v975 = vadd.f32 %v904, %v963
      %v976 = vadd.f32 %v905, %v963
      %v977 = vadd.f32 %v906, %v963
      %v978 = vadd.f32 %v907, %v963
      %v979 = vadd.f32 %v908, %v963
      %v980 = vadd.f32 %v909, %v963
      %v981 = vadd.f32 %v910, %v963
      %v982 = vadd.f32 %v911, %v963
      %v983 = vadd.f32 %v912, %v963
      %v984 = vadd.f32 %v913, %v963
      %v985 = vadd.f32 %v914, %v963
      %v986 = vadd.f32 %v915, %v963
      %v987 = vadd.f32 %v916, %v963
      %v988 = vadd.f32 %v917, %v963
      %v989 = vadd.f32 %v918, %v963
      %v990 = vadd.f32 %v919, %v963
      %v991 = vadd.f32 %v920, %v963
      %v992 = vadd.f32 %v921, %v963
      %v993 = vadd.f32 %v922, %v963
      %v994 = vadd.f32 %v923, %v963
      %v995 = vadd.f32 %v924, %v963
      %v996 = vadd.f32 %v925, %v963
      %v997 = vadd.f32 %v926, %v963
      %v998 = vadd.f32 %v927, %v963
      %v999 = vadd.f32 %v928, %v963
      %v1000 = vadd.f32 %v929, %v963
      %v1001 = vadd.f32 %v930, %v963
      %v1002 = vadd.f32 %v931, %v963
      %v1003 = vadd.f32 %v932, %v963
      %v1004 = vadd.f32 %v933, %v963
      %v1005 = vadd.f32 %v934, %v963
      %v1006 = vadd.f32 %v935, %v963
      %v1007 = vadd.f32 %v936, %v963
      %v1008 = vadd.f32 %v937, %v963
      %v1009 = vadd.f32 %v938, %v963
      %v1010 = vadd.f32 %v939, %v963
      %v1011 = vadd.f32 %v940, %v963
      %v1012 = vadd.f32 %v941, %v963
      %v1013 = vadd.f32 %v942, %v963
      %v1014 = vadd.f32 %v943, %v963
      %v1015 = vadd.f32 %v944, %v963
      %v1016 = vadd.f32 %v945, %v963
      %v1017 = vadd.f32 %v946, %v963
      %v1018 = vadd.f32 %v947, %v963
      %v1019 = vadd.f32 %v948, %v963
      %v1020 = vadd.f32 %v949, %v963
      %v1021 = vadd.f32 %v950, %v963
      %v1022 = vadd.f32 %v951, %v963
      %v1023 = vadd.f32 %v952, %v963
      %v1024 = vadd.f32 %v953, %v963
      %v1025 = vadd.f32 %v954, %v963
      %v1026 = vadd.f32 %v955, %v963
      %v1027 = vadd.f32 %v956, %v963
      %v1028 = vadd.f32 %v957, %v963
      %v1029 = vmax.f32 %v965, 0.0
      %v1030 = vmax.f32 %v966, 0.0
      %v1031 = vmax.f32 %v967, 0.0
      %v1032 = vmax.f32 %v968, 0.0
      %v1033 = vmax.f32 %v969, 0.0
      %v1034 = vmax.f32 %v970, 0.0
      %v1035 = vmax.f32 %v971, 0.0
      %v1036 = vmax.f32 %v972, 0.0
      %v1037 = vmax.f32 %v973, 0.0
      %v1038 = vmax.f32 %v974, 0.0
      %v1039 = vmax.f32 %v975, 0.0
      %v1040 = vmax.f32 %v976, 0.0
      %v1041 = vmax.f32 %v977, 0.0
      %v1042 = vmax.f32 %v978, 0.0
      %v1043 = vmax.f32 %v979, 0.0
      %v1044 = vmax.f32 %v980, 0.0
      %v1045 = vmax.f32 %v981, 0.0
      %v1046 = vmax.f32 %v982, 0.0
      %v1047 = vmax.f32 %v983, 0.0
      %v1048 = vmax.f32 %v984, 0.0
      %v1049 = vmax.f32 %v985, 0.0
      %v1050 = vmax.f32 %v986, 0.0
      %v1051 = vmax.f32 %v987, 0.0
      %v1052 = vmax.f32 %v988, 0.0
      %v1053 = vmax.f32 %v989, 0.0
      %v1054 = vmax.f32 %v990, 0.0
      %v1055 = vmax.f32 %v991, 0.0
      %v1056 = vmax.f32 %v992, 0.0
      %v1057 = vmax.f32 %v993, 0.0
      %v1058 = vmax.f32 %v994, 0.0
      %v1059 = vmax.f32 %v995, 0.0
      %v1060 = vmax.f32 %v996, 0.0
      %v1061 = vmax.f32 %v997, 0.0
      %v1062 = vmax.f32 %v998, 0.0
      %v1063 = vmax.f32 %v999, 0.0
      %v1064 = vmax.f32 %v1000, 0.0
      %v1065 = vmax.f32 %v1001, 0.0
      %v1066 = vmax.f32 %v1002, 0.0
      %v1067 = vmax.f32 %v1003, 0.0
      %v1068 = vmax.f32 %v1004, 0.0
      %v1069 = vmax.f32 %v1005, 0.0
      %v1070 = vmax.f32 %v1006, 0.0
      %v1071 = vmax.f32 %v1007, 0.0
      %v1072 = vmax.f32 %v1008, 0.0
      %v1073 = vmax.f32 %v1009, 0.0
      %v1074 = vmax.f32 %v1010, 0.0
      %v1075 = vmax.f32 %v1011, 0.0
      %v1076 = vmax.f32 %v1012, 0.0
      %v1077 = vmax.f32 %v1013, 0.0
      %v1078 = vmax.f32 %v1014, 0.0
      %v1079 = vmax.f32 %v1015, 0.0
      %v1080 = vmax.f32 %v1016, 0.0
      %v1081 = vmax.f32 %v1017, 0.0
      %v1082 = vmax.f32 %v1018, 0.0
      %v1083 = vmax.f32 %v1019, 0.0
      %v1084 = vmax.f32 %v1020, 0.0
      %v1085 = vmax.f32 %v1021, 0.0
      %v1086 = vmax.f32 %v1022, 0.0
      %v1087 = vmax.f32 %v1023, 0.0
      %v1088 = vmax.f32 %v1024, 0.0
      %v1089 = vmax.f32 %v1025, 0.0
      %v1090 = vmax.f32 %v1026, 0.0
      %v1091 = vmax.f32 %v1027, 0.0
      %v1092 = vmax.f32 %v1028, 0.0
      %v1093 = vpack.c.bf16 %v1030, %v1029
      %v1094 = vpack.c.bf16 %v1032, %v1031
      %v1095 = vpack.c.bf16 %v1034, %v1033
      %v1096 = vpack.c.bf16 %v1036, %v1035
      %v1097 = vpack.c.bf16 %v1038, %v1037
      %v1098 = vpack.c.bf16 %v1040, %v1039
      %v1099 = vpack.c.bf16 %v1042, %v1041
      %v1100 = vpack.c.bf16 %v1044, %v1043
      %v1101 = vpack.c.bf16 %v1046, %v1045
      %v1102 = vpack.c.bf16 %v1048, %v1047
      %v1103 = vpack.c.bf16 %v1050, %v1049
      %v1104 = vpack.c.bf16 %v1052, %v1051
      %v1105 = vpack.c.bf16 %v1054, %v1053
      %v1106 = vpack.c.bf16 %v1056, %v1055
      %v1107 = vpack.c.bf16 %v1058, %v1057
      %v1108 = vpack.c.bf16 %v1060, %v1059
      %v1109 = vpack.c.bf16 %v1062, %v1061
      %v1110 = vpack.c.bf16 %v1064, %v1063
      %v1111 = vpack.c.bf16 %v1066, %v1065
      %v1112 = vpack.c.bf16 %v1068, %v1067
      %v1113 = vpack.c.bf16 %v1070, %v1069
      %v1114 = vpack.c.bf16 %v1072, %v1071
      %v1115 = vpack.c.bf16 %v1074, %v1073
      %v1116 = vpack.c.bf16 %v1076, %v1075
      %v1117 = vpack.c.bf16 %v1078, %v1077
      %v1118 = vpack.c.bf16 %v1080, %v1079
      %v1119 = vpack.c.bf16 %v1082, %v1081
      %v1120 = vpack.c.bf16 %v1084, %v1083
      %v1121 = vpack.c.bf16 %v1086, %v1085
      %v1122 = vpack.c.bf16 %v1088, %v1087
      %v1123 = vpack.c.bf16 %v1090, %v1089
      %v1124 = vpack.c.bf16 %v1092, %v1091
      %v1157 = vunpack.c.l.b16 %v1093
      %v1158 = vunpack.c.h.b16 %v1093
      %v1159 = vunpack.c.l.b16 %v1094
      %v1160 = vunpack.c.h.b16 %v1094
      %v1161 = vunpack.c.l.b16 %v1095
      %v1162 = vunpack.c.h.b16 %v1095
      %v1163 = vunpack.c.l.b16 %v1096
      %v1164 = vunpack.c.h.b16 %v1096
      %v1165 = vunpack.c.l.b16 %v1097
      %v1166 = vunpack.c.h.b16 %v1097
      %v1167 = vunpack.c.l.b16 %v1098
      %v1168 = vunpack.c.h.b16 %v1098
      %v1169 = vunpack.c.l.b16 %v1099
      %v1170 = vunpack.c.h.b16 %v1099
      %v1171 = vunpack.c.l.b16 %v1100
      %v1172 = vunpack.c.h.b16 %v1100
      %v1173 = vunpack.c.l.b16 %v1101
      %v1174 = vunpack.c.h.b16 %v1101
      %v1175 = vunpack.c.l.b16 %v1102
      %v1176 = vunpack.c.h.b16 %v1102
      %v1177 = vunpack.c.l.b16 %v1103
      %v1178 = vunpack.c.h.b16 %v1103
      %v1179 = vunpack.c.l.b16 %v1104
      %v1180 = vunpack.c.h.b16 %v1104
      %v1181 = vunpack.c.l.b16 %v1105
      %v1182 = vunpack.c.h.b16 %v1105
      %v1183 = vunpack.c.l.b16 %v1106
      %v1184 = vunpack.c.h.b16 %v1106
      %v1185 = vunpack.c.l.b16 %v1107
      %v1186 = vunpack.c.h.b16 %v1107
      %v1187 = vunpack.c.l.b16 %v1108
      %v1188 = vunpack.c.h.b16 %v1108
      %v1189 = vunpack.c.l.b16 %v1109
      %v1190 = vunpack.c.h.b16 %v1109
      %v1191 = vunpack.c.l.b16 %v1110
      %v1192 = vunpack.c.h.b16 %v1110
      %v1193 = vunpack.c.l.b16 %v1111
      %v1194 = vunpack.c.h.b16 %v1111
      %v1195 = vunpack.c.l.b16 %v1112
      %v1196 = vunpack.c.h.b16 %v1112
      %v1197 = vunpack.c.l.b16 %v1113
      %v1198 = vunpack.c.h.b16 %v1113
      %v1199 = vunpack.c.l.b16 %v1114
      %v1200 = vunpack.c.h.b16 %v1114
      %v1201 = vunpack.c.l.b16 %v1115
      %v1202 = vunpack.c.h.b16 %v1115
      %v1203 = vunpack.c.l.b16 %v1116
      %v1204 = vunpack.c.h.b16 %v1116
      %v1205 = vunpack.c.l.b16 %v1117
      %v1206 = vunpack.c.h.b16 %v1117
      %v1207 = vunpack.c.l.b16 %v1118
      %v1208 = vunpack.c.h.b16 %v1118
      %v1209 = vunpack.c.l.b16 %v1119
      %v1210 = vunpack.c.h.b16 %v1119
      %v1211 = vunpack.c.l.b16 %v1120
      %v1212 = vunpack.c.h.b16 %v1120
      %v1213 = vunpack.c.l.b16 %v1121
      %v1214 = vunpack.c.h.b16 %v1121
      %v1215 = vunpack.c.l.b16 %v1122
      %v1216 = vunpack.c.h.b16 %v1122
      %v1217 = vunpack.c.l.b16 %v1123
      %v1218 = vunpack.c.h.b16 %v1123
      %v1219 = vunpack.c.l.b16 %v1124
      %v1220 = vunpack.c.h.b16 %v1124
      %v1221 = vpack.c.b16 %v1157, %v1157
      %v1222 = vpack.c.b16 %v1158, %v1158
      %v1223 = vpack.c.b16 %v1159, %v1159
      %v1224 = vpack.c.b16 %v1160, %v1160
      %v1225 = vpack.c.b16 %v1161, %v1161
      %v1226 = vpack.c.b16 %v1162, %v1162
      %v1227 = vpack.c.b16 %v1163, %v1163
      %v1228 = vpack.c.b16 %v1164, %v1164
      %v1229 = vpack.c.b16 %v1165, %v1165
      %v1230 = vpack.c.b16 %v1166, %v1166
      %v1231 = vpack.c.b16 %v1167, %v1167
      %v1232 = vpack.c.b16 %v1168, %v1168
      %v1233 = vpack.c.b16 %v1169, %v1169
      %v1234 = vpack.c.b16 %v1170, %v1170
      %v1235 = vpack.c.b16 %v1171, %v1171
      %v1236 = vpack.c.b16 %v1172, %v1172
      %v1237 = vpack.c.b16 %v1173, %v1173
      %v1238 = vpack.c.b16 %v1174, %v1174
      %v1239 = vpack.c.b16 %v1175, %v1175
      %v1240 = vpack.c.b16 %v1176, %v1176
      %v1241 = vpack.c.b16 %v1177, %v1177
      %v1242 = vpack.c.b16 %v1178, %v1178
      %v1243 = vpack.c.b16 %v1179, %v1179
      %v1244 = vpack.c.b16 %v1180, %v1180
      %v1245 = vpack.c.b16 %v1181, %v1181
      %v1246 = vpack.c.b16 %v1182, %v1182
      %v1247 = vpack.c.b16 %v1183, %v1183
      %v1248 = vpack.c.b16 %v1184, %v1184
      %v1249 = vpack.c.b16 %v1185, %v1185
      %v1250 = vpack.c.b16 %v1186, %v1186
      %v1251 = vpack.c.b16 %v1187, %v1187
      %v1252 = vpack.c.b16 %v1188, %v1188
      %v1253 = vpack.c.b16 %v1189, %v1189
      %v1254 = vpack.c.b16 %v1190, %v1190
      %v1255 = vpack.c.b16 %v1191, %v1191
      %v1256 = vpack.c.b16 %v1192, %v1192
      %v1257 = vpack.c.b16 %v1193, %v1193
      %v1258 = vpack.c.b16 %v1194, %v1194
      %v1259 = vpack.c.b16 %v1195, %v1195
      %v1260 = vpack.c.b16 %v1196, %v1196
      %v1261 = vpack.c.b16 %v1197, %v1197
      %v1262 = vpack.c.b16 %v1198, %v1198
      %v1263 = vpack.c.b16 %v1199, %v1199
      %v1264 = vpack.c.b16 %v1200, %v1200
      %v1265 = vpack.c.b16 %v1201, %v1201
      %v1266 = vpack.c.b16 %v1202, %v1202
      %v1267 = vpack.c.b16 %v1203, %v1203
      %v1268 = vpack.c.b16 %v1204, %v1204
      %v1269 = vpack.c.b16 %v1205, %v1205
      %v1270 = vpack.c.b16 %v1206, %v1206
      %v1271 = vpack.c.b16 %v1207, %v1207
      %v1272 = vpack.c.b16 %v1208, %v1208
      %v1273 = vpack.c.b16 %v1209, %v1209
      %v1274 = vpack.c.b16 %v1210, %v1210
      %v1275 = vpack.c.b16 %v1211, %v1211
      %v1276 = vpack.c.b16 %v1212, %v1212
      %v1277 = vpack.c.b16 %v1213, %v1213
      %v1278 = vpack.c.b16 %v1214, %v1214
      %v1279 = vpack.c.b16 %v1215, %v1215
      %v1280 = vpack.c.b16 %v1216, %v1216
      %v1281 = vpack.c.b16 %v1217, %v1217
      %v1282 = vpack.c.b16 %v1218, %v1218
      %v1283 = vpack.c.b16 %v1219, %v1219
      %v1284 = vpack.c.b16 %v1220, %v1220
      %1349 = vst [vmem:[#allocation3] sm:$0xf] %v1221
      %1350 = vst [vmem:[#allocation3 + $0x4] sm:$0xf] %v1222
      %1351 = vst [vmem:[#allocation3 + $0x8] sm:$0xf] %v1223
      %1352 = vst [vmem:[#allocation3 + $0xc] sm:$0xf] %v1224
      %1353 = vst [vmem:[#allocation3 + $0x10] sm:$0xf] %v1225
      %1354 = vst [vmem:[#allocation3 + $0x14] sm:$0xf] %v1226
      %1355 = vst [vmem:[#allocation3 + $0x18] sm:$0xf] %v1227
      %1356 = vst [vmem:[#allocation3 + $0x1c] sm:$0xf] %v1228
      %1357 = vst [vmem:[#allocation3 + $0x20] sm:$0xf] %v1229
      %1358 = vst [vmem:[#allocation3 + $0x24] sm:$0xf] %v1230
      %1359 = vst [vmem:[#allocation3 + $0x28] sm:$0xf] %v1231
      %1360 = vst [vmem:[#allocation3 + $0x2c] sm:$0xf] %v1232
      %1361 = vst [vmem:[#allocation3 + $0x30] sm:$0xf] %v1233
      %1362 = vst [vmem:[#allocation3 + $0x34] sm:$0xf] %v1234
      %1363 = vst [vmem:[#allocation3 + $0x38] sm:$0xf] %v1235
      %1364 = vst [vmem:[#allocation3 + $0x3c] sm:$0xf] %v1236
      %1365 = vst [vmem:[#allocation3 + $0x40] sm:$0xf] %v1237
      %1366 = vst [vmem:[#allocation3 + $0x44] sm:$0xf] %v1238
      %1367 = vst [vmem:[#allocation3 + $0x48] sm:$0xf] %v1239
      %1368 = vst [vmem:[#allocation3 + $0x4c] sm:$0xf] %v1240
      %1369 = vst [vmem:[#allocation3 + $0x50] sm:$0xf] %v1241
      %1370 = vst [vmem:[#allocation3 + $0x54] sm:$0xf] %v1242
      %1371 = vst [vmem:[#allocation3 + $0x58] sm:$0xf] %v1243
      %1372 = vst [vmem:[#allocation3 + $0x5c] sm:$0xf] %v1244
      %1373 = vst [vmem:[#allocation3 + $0x60] sm:$0xf] %v1245
      %1374 = vst [vmem:[#allocation3 + $0x64] sm:$0xf] %v1246
      %1375 = vst [vmem:[#allocation3 + $0x68] sm:$0xf] %v1247
      %1376 = vst [vmem:[#allocation3 + $0x6c] sm:$0xf] %v1248
      %1377 = vst [vmem:[#allocation3 + $0x70] sm:$0xf] %v1249
      %1378 = vst [vmem:[#allocation3 + $0x74] sm:$0xf] %v1250
      %1379 = vst [vmem:[#allocation3 + $0x78] sm:$0xf] %v1251
      %1380 = vst [vmem:[#allocation3 + $0x7c] sm:$0xf] %v1252
      %1381 = vst [vmem:[#allocation3 + $0x80] sm:$0xf] %v1253
      %1382 = vst [vmem:[#allocation3 + $0x84] sm:$0xf] %v1254
      %1383 = vst [vmem:[#allocation3 + $0x88] sm:$0xf] %v1255
      %1384 = vst [vmem:[#allocation3 + $0x8c] sm:$0xf] %v1256
      %1385 = vst [vmem:[#allocation3 + $0x90] sm:$0xf] %v1257
      %1386 = vst [vmem:[#allocation3 + $0x94] sm:$0xf] %v1258
      %1387 = vst [vmem:[#allocation3 + $0x98] sm:$0xf] %v1259
      %1388 = vst [vmem:[#allocation3 + $0x9c] sm:$0xf] %v1260
      %1389 = vst [vmem:[#allocation3 + $0xa0] sm:$0xf] %v1261
      %1390 = vst [vmem:[#allocation3 + $0xa4] sm:$0xf] %v1262
      %1391 = vst [vmem:[#allocation3 + $0xa8] sm:$0xf] %v1263
      %1392 = vst [vmem:[#allocation3 + $0xac] sm:$0xf] %v1264
      %1393 = vst [vmem:[#allocation3 + $0xb0] sm:$0xf] %v1265
      %1394 = vst [vmem:[#allocation3 + $0xb4] sm:$0xf] %v1266
      %1395 = vst [vmem:[#allocation3 + $0xb8] sm:$0xf] %v1267
      %1396 = vst [vmem:[#allocation3 + $0xbc] sm:$0xf] %v1268
      %1397 = vst [vmem:[#allocation3 + $0xc0] sm:$0xf] %v1269
      %1398 = vst [vmem:[#allocation3 + $0xc4] sm:$0xf] %v1270
      %1399 = vst [vmem:[#allocation3 + $0xc8] sm:$0xf] %v1271
      %1400 = vst [vmem:[#allocation3 + $0xcc] sm:$0xf] %v1272
      %1401 = vst [vmem:[#allocation3 + $0xd0] sm:$0xf] %v1273
      %1402 = vst [vmem:[#allocation3 + $0xd4] sm:$0xf] %v1274
      %1403 = vst [vmem:[#allocation3 + $0xd8] sm:$0xf] %v1275
      %1404 = vst [vmem:[#allocation3 + $0xdc] sm:$0xf] %v1276
      %1405 = vst [vmem:[#allocation3 + $0xe0] sm:$0xf] %v1277
      %1406 = vst [vmem:[#allocation3 + $0xe4] sm:$0xf] %v1278
      %1407 = vst [vmem:[#allocation3 + $0xe8] sm:$0xf] %v1279
      %1408 = vst [vmem:[#allocation3 + $0xec] sm:$0xf] %v1280
      %1409 = vst [vmem:[#allocation3 + $0xf0] sm:$0xf] %v1281
      %1410 = vst [vmem:[#allocation3 + $0xf4] sm:$0xf] %v1282
      %1411 = vst [vmem:[#allocation3 + $0xf8] sm:$0xf] %v1283
      %1412 = vst [vmem:[#allocation3 + $0xfc] sm:$0xf] %v1284
    $region21: #{tpu_custom_call.1} parent=1 // pred_fallthru
      _
    // Predicated region
    $region22: #{tpu_custom_call.1} parent=1 // pred_check
      _
    $region23: #{tpu_custom_call.1} parent=1 // pred_check_branch
      %1414 = sbr.rel (0) target = $region25
    $region24: #{tpu_custom_call.1} parent=1 // pred_region
      %s1416 = ssub.s32 4096, 4096
      %1417 = vsyncadd [#allocation4], %s1416
      %s1418 = sshll.u32 [#allocation3], 4
      %s1419 = int_to_ptr.vmem [resolvable:$true] %s1418
      %1424 = dma.vmem_to_hbm [thread:$0]  %s1419, 4096, %s3, [#allocation4], 64, 64, 4
    $region25: #{tpu_custom_call.1} parent=1 // pred_fallthru
      _
    // Predicated region
    $region26: #{tpu_custom_call.1} parent=1 // pred_check
      _
    $region27: #{tpu_custom_call.1} parent=1 // pred_check_branch
      %1426 = sbr.rel (0) target = $region29
    $region28: #{tpu_custom_call.1} parent=1 // pred_region
      %1427 = dma.done [#allocation4], 4096
    $region29: #{tpu_custom_call.1} parent=1 // pred_fallthru
      _
    %1428 = vsyncpa [#allocation4], 1

</llo_original>
